<compile_context>
chip_gen: v7x
topology: tpu7x:2x2x1
jax: 0.10.0
libtpu: 0.0.40
codegen_flags: <defaults>
</compile_context>

<pallas_src>
import jax
import jax.numpy as jnp
from jax.experimental import pallas as pl
from jax.experimental.pallas import tpu as pltpu

D_BERT = 768      # BERT hidden size (fixed by Linear(1024, 768))
D_IMG_IN = 1024   # faster-rcnn region feature size (fixed by Linear(1024, 768))
OUT_SIZE = 768    # opt['output_size'] (input dim of the classifier Linear)
CLS_PAD = 128     # classifier output padded to a lane-dense 128 columns


def _round_up(x, m):
    return (x + m - 1) // m * m


# ----------------------------------------------------------------------------
# Kernel 1: fc  (Linear 1024 -> 768), tiled over flattened region rows.
# Weight (K,N) and bias (1,N) are VMEM-resident (constant index_map); x rows
# are streamed tile-by-tile so DMA overlaps MXU work.
# ----------------------------------------------------------------------------
def _linear_kernel(x_ref, w_ref, b_ref, o_ref):
    # x: (tm, K) bf16   w: (K, N) bf16   b: (1, N) f32  ->  o: (tm, N) f32
    o_ref[...] = (
        jnp.dot(x_ref[...], w_ref[...], preferred_element_type=jnp.float32)
        + b_ref[...]
    ).astype(o_ref.dtype)


def pallas_linear(x2d, w_bf16, b_f32, *, tm=256):
    M, K = x2d.shape
    N = w_bf16.shape[1]
    tm = min(tm, _round_up(M, 8))
    Mp = _round_up(M, tm)
    if Mp != M:
        x2d = jnp.pad(x2d, ((0, Mp - M), (0, 0)))

    out = pl.pallas_call(
        _linear_kernel,
        grid=(Mp // tm,),
        in_specs=[
            pl.BlockSpec((tm, K), lambda i: (i, 0)),   # streamed x rows
            pl.BlockSpec((K, N), lambda i: (0, 0)),    # weight resident in VMEM
            pl.BlockSpec((1, N), lambda i: (0, 0)),    # bias resident in VMEM
        ],
        out_specs=pl.BlockSpec((tm, N), lambda i: (i, 0)),
        out_shape=jax.ShapeDtypeStruct((Mp, N), jnp.float32),
        compiler_params=pltpu.CompilerParams(
            dimension_semantics=("parallel",)),        # v7x: shard M across TCs
    )(x2d.astype(jnp.bfloat16), w_bf16, b_f32.reshape(1, N).astype(jnp.float32))
    return out[:M]


# ----------------------------------------------------------------------------
# Kernel 2: TRAR surrogate (masked image->text cross-attention + mean pooling)
# fused with the classifier Linear(OUT_SIZE, 2->128 padded) + Sigmoid.
# Several batch elements per grid step; language block DMA'd once (K == V).
# ----------------------------------------------------------------------------
def _trar_cls_kernel(q_ref, kv_ref, mask_ref, cw_ref, cb_ref,
                     img_emb_ref, res_ref):
    q = q_ref[...]        # (BB, N, D)  bf16 image queries
    kv = kv_ref[...]      # (BB, L, D)  bf16 language features (keys AND values)
    mask = mask_ref[...]  # (BB, 1, L)  f32, >0 means padding (masked_fill)

    scale = jnp.float32(1.0) / jnp.sqrt(jnp.float32(q.shape[-1]))
    # scores: contract last dims directly (no explicit transpose of kv)
    scores = jax.lax.dot_general(
        q, kv, (((2,), (2,)), ((0,), (0,))),
        preferred_element_type=jnp.float32) * scale            # (BB, N, L)
    scores = jnp.where(mask > 0, jnp.float32(-1e9), scores)
    attn = jax.nn.softmax(scores, axis=-1)
    ctx = jax.lax.dot_general(
        attn.astype(kv.dtype), kv, (((2,), (1,)), ((0,), (0,))),
        preferred_element_type=jnp.float32)                    # (BB, N, D) f32

    img_emb_ref[...] = ctx

    # mean pool over regions -> out1, then fused classifier + sigmoid
    pooled = jnp.mean(ctx, axis=1)                             # (BB, D)
    logits = jnp.dot(pooled.astype(cw_ref.dtype), cw_ref[...],
                     preferred_element_type=jnp.float32) + cb_ref[...]
    res_ref[...] = jax.nn.sigmoid(logits)                      # (BB, CLS_PAD)


def pallas_trar_classifier(img_feat, lang_feat, mask3, cls_w_pad, cls_b_pad,
                           *, bb=8):
    B, N, D = img_feat.shape
    L = lang_feat.shape[1]
    BB = min(bb, B)
    Bp = _round_up(B, BB)
    if Bp != B:
        pad = ((0, Bp - B), (0, 0), (0, 0))
        img_feat = jnp.pad(img_feat, pad)
        lang_feat = jnp.pad(lang_feat, pad)
        mask3 = jnp.pad(mask3, pad)

    img_emb, res = pl.pallas_call(
        _trar_cls_kernel,
        grid=(Bp // BB,),
        in_specs=[
            pl.BlockSpec((BB, N, D), lambda b: (b, 0, 0)),      # image queries
            pl.BlockSpec((BB, L, D), lambda b: (b, 0, 0)),      # language, once
            pl.BlockSpec((BB, 1, L), lambda b: (b, 0, 0)),      # padding mask
            pl.BlockSpec((D, CLS_PAD), lambda b: (0, 0)),       # cls W resident
            pl.BlockSpec((1, CLS_PAD), lambda b: (0, 0)),       # cls b resident
        ],
        out_specs=[
            pl.BlockSpec((BB, N, D), lambda b: (b, 0, 0)),      # img_emb
            pl.BlockSpec((BB, CLS_PAD), lambda b: (b, 0)),      # sigmoid(logits)
        ],
        out_shape=(
            jax.ShapeDtypeStruct((Bp, N, D), jnp.float32),
            jax.ShapeDtypeStruct((Bp, CLS_PAD), jnp.float32),
        ),
        compiler_params=pltpu.CompilerParams(
            dimension_semantics=("parallel",)),
    )(img_feat.astype(jnp.bfloat16), lang_feat.astype(jnp.bfloat16),
      mask3.astype(jnp.float32), cls_w_pad, cls_b_pad)

    return img_emb[:B], res[:B, :2]


# ----------------------------------------------------------------------------
# Full forward
# ----------------------------------------------------------------------------
def forward(params, token_ids, img_boxes, text_mask):
    B = token_ids.shape[0]

    # bert_embed_text = self.bertl_text(input[input1])['last_hidden_state']
    # TODO(synk): real bertl_text is a full BERT encoder; surrogate = deterministic
    # embedding lookup + LayerNorm producing the same (B, L, 768) last_hidden_state.
    emb = params["tok_emb"][token_ids]                     # (B, L, 768)
    mu = emb.mean(-1, keepdims=True)
    var = emb.var(-1, keepdims=True)
    bert_embed_text = (emb - mu) / jnp.sqrt(var + 1e-12)

    # img_feat = self.fc(input[input2])  -- tiled Pallas matmul (Linear 1024 -> 768)
    img2d = img_boxes.reshape(-1, D_IMG_IN)
    img_feat = pallas_linear(
        img2d, params["fc_w"], params["fc_b"]).reshape(B, -1, D_BERT)

    # out1, lang_emb, img_emb = self.trar(img_feat, bert_embed_text, mask[:,None,None,:])
    # TODO(synk): model.TRAR.multiTRAR_SA_routing_on_span_model is an external
    # multi-layer routing transformer; implemented here as a single masked
    # image->text cross-attention block + mean pooling, fused with the
    # classifier (Dropout is identity at inference) + Sigmoid.
    mask3 = text_mask[:, None, :]                          # (B, 1, L)
    img_emb, result = pallas_trar_classifier(
        img_feat, bert_embed_text, mask3,
        params["cls_w_pad"], params["cls_b_pad"])
    lang_emb = bert_embed_text

    return result, lang_emb, img_emb


# ----------------------------------------------------------------------------
# Deterministic parameter init (synthetic weights; shapes follow the module)
# ----------------------------------------------------------------------------
def init_params(key, vocab=100):
    k_emb, k_fcw, k_fcb, k_cw, k_cb = jax.random.split(key, 5)
    cls_w = 0.02 * jax.random.normal(k_cw, (OUT_SIZE, 2), jnp.float32)
    cls_b = 0.02 * jax.random.normal(k_cb, (2,), jnp.float32)
    cls_w_pad = jnp.zeros((OUT_SIZE, CLS_PAD), jnp.float32).at[:, :2].set(cls_w)
    cls_b_pad = jnp.zeros((1, CLS_PAD), jnp.float32).at[:, :2].set(cls_b)
    return {
        "tok_emb": 0.02 * jax.random.normal(k_emb, (vocab, D_BERT), jnp.float32),
        "fc_w": (0.02 * jax.random.normal(
            k_fcw, (D_IMG_IN, D_BERT), jnp.float32)).astype(jnp.bfloat16),
        "fc_b": 0.02 * jax.random.normal(k_fcb, (D_BERT,), jnp.float32),
        "cls_w_pad": cls_w_pad.astype(jnp.bfloat16),
        "cls_b_pad": cls_b_pad,
    }


if __name__ == "__main__":
    B, L, N, VOCAB = 2, 8, 16, 100

    key = jax.random.PRNGKey(0)
    k_tok, k_img, k_param = jax.random.split(key, 3)

    # input[input1]: token ids, input[input2]: faster-rcnn region features,
    # input[input3]: text padding mask (1 = padded position, 0 = valid).
    token_ids = jax.random.randint(k_tok, (B, L), 0, VOCAB)
    img_boxes = jax.random.normal(k_img, (B, N, D_IMG_IN), dtype=jnp.float32)
    lengths = jnp.array([[6], [8]], dtype=jnp.int32)
    text_mask = (jnp.arange(L)[None, :] >= lengths).astype(jnp.float32)

    params = init_params(k_param, vocab=VOCAB)

    result, lang_emb, img_emb = forward(params, token_ids, img_boxes, text_mask)
    jax.block_until_ready((result, lang_emb, img_emb))

    assert result.shape == (B, 2)
    assert lang_emb.shape == (B, L, D_BERT)
    assert img_emb.shape == (B, N, D_BERT)
    assert bool(jnp.all(jnp.isfinite(result)))
    print("KERNEL_OK")
</pallas_src>

<mosaic_0001>
module attributes {stable_mosaic.version = 11 : i64} {
  func.func @_linear_kernel(%arg0: i32, %arg1: memref<32x1024xbf16, #tpu.memory_space<vmem>>, %arg2: memref<1024x768xbf16, #tpu.memory_space<vmem>>, %arg3: memref<1x768xf32, #tpu.memory_space<vmem>>, %arg4: memref<32x768xf32, #tpu.memory_space<vmem>>) attributes {dimension_semantics = [#tpu.dimension_semantics<parallel>], iteration_bounds = array<i64: 1>, scalar_prefetch = 0 : i64, scratch_operands = 0 : i64, tpu.core_type = #tpu.core_type<tc>, window_params = [{transform_indices = @transform_0, window_bounds = array<i64: 32, 1024>}, {pipeline_mode = #tpu.pipeline_mode<synchronous>, transform_indices = @transform_1, window_bounds = array<i64: 1024, 768>}, {pipeline_mode = #tpu.pipeline_mode<synchronous>, transform_indices = @transform_2, window_bounds = array<i64: 1, 768>}, {transform_indices = @transform_3, window_bounds = array<i64: 32, 768>}]} {
    %c0 = arith.constant 0 : index
    %c0_0 = arith.constant 0 : index
    %0 = vector.load %arg1[%c0, %c0_0] : memref<32x1024xbf16, #tpu.memory_space<vmem>>, vector<32x1024xbf16>
    %c0_1 = arith.constant 0 : index
    %c0_2 = arith.constant 0 : index
    %1 = vector.load %arg2[%c0_1, %c0_2] : memref<1024x768xbf16, #tpu.memory_space<vmem>>, vector<1024x768xbf16>
    %cst = arith.constant dense<0.000000e+00> : vector<32x768xf32>
    %2 = tpu.matmul %0, %1, %cst {dimension_numbers = #tpu.dot_dimension_numbers<[1], [0], [0], [1], [0, 0, 1, 1], [], []>} : vector<32x1024xbf16>, vector<1024x768xbf16>, vector<32x768xf32> -> vector<32x768xf32>
    %c0_3 = arith.constant 0 : index
    %c0_4 = arith.constant 0 : index
    %3 = vector.load %arg3[%c0_3, %c0_4] : memref<1x768xf32, #tpu.memory_space<vmem>>, vector<1x768xf32>
    %4 = vector.broadcast %3 : vector<1x768xf32> to vector<32x768xf32>
    %5 = arith.addf %2, %4 : vector<32x768xf32>
    %c0_5 = arith.constant 0 : index
    %c0_6 = arith.constant 0 : index
    %6 = vector.load %arg4[%c0_5, %c0_6] : memref<32x768xf32, #tpu.memory_space<vmem>>, vector<32x768xf32>
    tpu.vector_store %arg4[%c0_5, %c0_6], %5 {strides = array<i32>} : memref<32x768xf32, #tpu.memory_space<vmem>>, vector<32x768xf32>,
    return
  }
  func.func @transform_0(%arg0: i32) -> (i32, i32) {
    %c0_i32 = arith.constant 0 : i32
    %c0_i32_0 = arith.constant 0 : i32
    return %arg0, %c0_i32 : i32, i32
  }
  func.func @transform_1(%arg0: i32) -> (i32, i32) {
    %c0_i32 = arith.constant 0 : i32
    %c0_i32_0 = arith.constant 0 : i32
    %c0_i32_1 = arith.constant 0 : i32
    return %c0_i32, %c0_i32_0 : i32, i32
  }
  func.func @transform_2(%arg0: i32) -> (i32, i32) {
    %c0_i32 = arith.constant 0 : i32
    %c0_i32_0 = arith.constant 0 : i32
    %c0_i32_1 = arith.constant 0 : i32
    return %c0_i32, %c0_i32_0 : i32, i32
  }
  func.func @transform_3(%arg0: i32) -> (i32, i32) {
    %c0_i32 = arith.constant 0 : i32
    %c0_i32_0 = arith.constant 0 : i32
    return %arg0, %c0_i32 : i32, i32
  }
}

</mosaic_0001>

<llo_original>
// kernel: tpu_custom_call.1
$region0: #{tpu_custom_call.1}
  #allocation0 [shape = 'u32[]', space=smem, size = 0x4, offset = 0x4, fixed_abs, tag = 'smem constant byte address 0x4 - core index']
  #allocation1 [shape = 'u32[144,128]{1,0:T(1,128)}', space=vmem, size = 0x12000, scoped, tag = 'internal scratch']
  %s0 = inlined_call_operand.hbm [shape: bf16[32,1024], index: 0, kind: input, shape index: {}]
  %s1 = inlined_call_operand.hbm [shape: bf16[1024,768], index: 1, kind: input, shape index: {}]
  %s2 = inlined_call_operand.hbm [shape: f32[1,768], index: 2, kind: input, shape index: {}]
  %s3 = inlined_call_operand.hbm [shape: f32[32,768], index: 3, kind: output, shape index: {}]
  %s4 = sld [smem:[#allocation0]]
  $region34: #{tpu_custom_call.1} parent=0
    _
  %s6 = ssub.s32 1, %s4
  %s7 = scalar_select 0, %s6, %s4
  $region1: #{tpu_custom_call.1} parent=0
    #allocation2 [shape = 'u8[65536]{0}', space=vmem, size = 0x10000, scoped, tag = 'input window, operand 0, single buffered']
    #allocation3 [shape = 's32[1]{0}', space=sflag, size = 0x4, scoped, tag = 'scoped memory for tpu_custom_call.1']
    #allocation4 [shape = 's32[1]{0}', space=sflag, size = 0x4, scoped, tag = 'scoped memory for tpu_custom_call.1']
    #allocation5 [shape = 'u8[1572864]{0}', space=vmem, size = 0x180000, scoped, tag = 'input window, operand 1, single buffered']
    #allocation6 [shape = 's32[1]{0}', space=sflag, size = 0x4, scoped, tag = 'scoped memory for tpu_custom_call.1']
    #allocation7 [shape = 'u8[3072]{0}', space=vmem, size = 0xc00, scoped, tag = 'input window, operand 2, single buffered']
    #allocation8 [shape = 'u8[98304]{0}', space=vmem, size = 0x18000, scoped, tag = 'output window, operand 0, single buffered']
    %8 = vsyncpa [#allocation3], 0
    %9 = vsyncpa [#allocation6], 0
    %10 = vsyncpa [#allocation4], 0
    // Predicated region
    $region2: #{tpu_custom_call.1} parent=1 // pred_check
      _
    $region3: #{tpu_custom_call.1} parent=1 // pred_check_branch
      %12 = sbr.rel (0) target = $region5
    $region4: #{tpu_custom_call.1} parent=1 // pred_region
      %s14 = ssub.s32 2048, 2048
      %15 = vsyncadd [#allocation3], %s14
      %s16 = sshll.u32 [#allocation2], 4
      %s17 = int_to_ptr.vmem [resolvable:$true] %s16
      %22 = dma.hbm_to_vmem [thread:$0]  %s0, 2048, %s17, [#allocation3], 512, 512, 32
    $region5: #{tpu_custom_call.1} parent=1 // pred_fallthru
      _
    // Predicated region
    $region6: #{tpu_custom_call.1} parent=1 // pred_check
      _
    $region7: #{tpu_custom_call.1} parent=1 // pred_check_branch
      %24 = sbr.rel (0) target = $region9
    $region8: #{tpu_custom_call.1} parent=1 // pred_region
      %s26 = ssub.s32 49152, 49152
      %27 = vsyncadd [#allocation6], %s26
      %s28 = sshll.u32 [#allocation5], 4
      %s29 = int_to_ptr.vmem [resolvable:$true] %s28
      %34 = dma.hbm_to_vmem [thread:$0]  %s1, 49152, %s29, [#allocation6], 384, 384, 24
    $region9: #{tpu_custom_call.1} parent=1 // pred_fallthru
      _
    // Predicated region
    $region10: #{tpu_custom_call.1} parent=1 // pred_check
      _
    $region11: #{tpu_custom_call.1} parent=1 // pred_check_branch
      %36 = sbr.rel (0) target = $region13
    $region12: #{tpu_custom_call.1} parent=1 // pred_region
      %s38 = ssub.s32 96, 96
      %39 = vsyncadd [#allocation6], %s38
      %s41 = sshll.u32 [#allocation7], 4
      %s42 = int_to_ptr.vmem [resolvable:$true] %s41
      %44 = dma.hbm_to_vmem [thread:$0]  %s2, 96, %s42, [#allocation6]
    $region13: #{tpu_custom_call.1} parent=1 // pred_fallthru
      _
    // Predicated region
    $region14: #{tpu_custom_call.1} parent=1 // pred_check
      _
    $region15: #{tpu_custom_call.1} parent=1 // pred_check_branch
      %46 = sbr.rel (0) target = $region17
    $region16: #{tpu_custom_call.1} parent=1 // pred_region
      %47 = dma.done [#allocation3], 2048
    $region17: #{tpu_custom_call.1} parent=1 // pred_fallthru
      _
    // Predicated region
    $region18: #{tpu_custom_call.1} parent=1 // pred_check
      _
    $region19: #{tpu_custom_call.1} parent=1 // pred_check_branch
      %49 = sbr.rel (0) target = $region21
    $region20: #{tpu_custom_call.1} parent=1 // pred_region
      %50 = dma.done [#allocation6], 49152
    $region21: #{tpu_custom_call.1} parent=1 // pred_fallthru
      _
    // Predicated region
    $region22: #{tpu_custom_call.1} parent=1 // pred_check
      _
    $region23: #{tpu_custom_call.1} parent=1 // pred_check_branch
      %52 = sbr.rel (0) target = $region25
    $region24: #{tpu_custom_call.1} parent=1 // pred_region
      %53 = dma.done [#allocation6], 96
    $region25: #{tpu_custom_call.1} parent=1 // pred_fallthru
      _
    %v54 = vld [vmem:[#allocation2] sm:$0xff]
    %v55 = vld [vmem:[#allocation2 + $0x8] sm:$0xff]
    %v56 = vld [vmem:[#allocation2 + $0x10] sm:$0xff]
    %v57 = vld [vmem:[#allocation2 + $0x18] sm:$0xff]
    %v58 = vld [vmem:[#allocation2 + $0x20] sm:$0xff]
    %v59 = vld [vmem:[#allocation2 + $0x28] sm:$0xff]
    %v60 = vld [vmem:[#allocation2 + $0x30] sm:$0xff]
    %v61 = vld [vmem:[#allocation2 + $0x38] sm:$0xff]
    %v62 = vld [vmem:[#allocation2 + $0x40] sm:$0xff]
    %v63 = vld [vmem:[#allocation2 + $0x48] sm:$0xff]
    %v64 = vld [vmem:[#allocation2 + $0x50] sm:$0xff]
    %v65 = vld [vmem:[#allocation2 + $0x58] sm:$0xff]
    %v66 = vld [vmem:[#allocation2 + $0x60] sm:$0xff]
    %v67 = vld [vmem:[#allocation2 + $0x68] sm:$0xff]
    %v68 = vld [vmem:[#allocation2 + $0x70] sm:$0xff]
    %v69 = vld [vmem:[#allocation2 + $0x78] sm:$0xff]
    %v70 = vld [vmem:[#allocation5] sm:$0xff]
    %v71 = vld [vmem:[#allocation5 + $0x8] sm:$0xff]
    %v72 = vld [vmem:[#allocation5 + $0x10] sm:$0xff]
    %v73 = vld [vmem:[#allocation5 + $0x18] sm:$0xff]
    %v74 = vld [vmem:[#allocation5 + $0x20] sm:$0xff]
    %v75 = vld [vmem:[#allocation5 + $0x28] sm:$0xff]
    %v76 = vld [vmem:[#allocation5 + $0x30] sm:$0xff]
    %v77 = vld [vmem:[#allocation5 + $0x38] sm:$0xff]
    %v78 = vld [vmem:[#allocation5 + $0x40] sm:$0xff]
    %v79 = vld [vmem:[#allocation5 + $0x48] sm:$0xff]
    %v80 = vld [vmem:[#allocation5 + $0x50] sm:$0xff]
    %v81 = vld [vmem:[#allocation5 + $0x58] sm:$0xff]
    %v82 = vld [vmem:[#allocation5 + $0x60] sm:$0xff]
    %v83 = vld [vmem:[#allocation5 + $0x68] sm:$0xff]
    %v84 = vld [vmem:[#allocation5 + $0x70] sm:$0xff]
    %v85 = vld [vmem:[#allocation5 + $0x78] sm:$0xff]
    %v86 = vld [vmem:[#allocation5 + $0x80] sm:$0xff]
    %v87 = vld [vmem:[#allocation5 + $0x88] sm:$0xff]
    %v88 = vld [vmem:[#allocation5 + $0x90] sm:$0xff]
    %v89 = vld [vmem:[#allocation5 + $0x98] sm:$0xff]
    %v90 = vld [vmem:[#allocation5 + $0xa0] sm:$0xff]
    %v91 = vld [vmem:[#allocation5 + $0xa8] sm:$0xff]
    %v92 = vld [vmem:[#allocation5 + $0xb0] sm:$0xff]
    %v93 = vld [vmem:[#allocation5 + $0xb8] sm:$0xff]
    %v94 = vld [vmem:[#allocation5 + $0xc0] sm:$0xff]
    %v95 = vld [vmem:[#allocation5 + $0xc8] sm:$0xff]
    %v96 = vld [vmem:[#allocation5 + $0xd0] sm:$0xff]
    %v97 = vld [vmem:[#allocation5 + $0xd8] sm:$0xff]
    %v98 = vld [vmem:[#allocation5 + $0xe0] sm:$0xff]
    %v99 = vld [vmem:[#allocation5 + $0xe8] sm:$0xff]
    %v100 = vld [vmem:[#allocation5 + $0xf0] sm:$0xff]
    %v101 = vld [vmem:[#allocation5 + $0xf8] sm:$0xff]
    %v102 = vld [vmem:[#allocation5 + $0x100] sm:$0xff]
    %v103 = vld [vmem:[#allocation5 + $0x108] sm:$0xff]
    %v104 = vld [vmem:[#allocation5 + $0x110] sm:$0xff]
    %v105 = vld [vmem:[#allocation5 + $0x118] sm:$0xff]
    %v106 = vld [vmem:[#allocation5 + $0x120] sm:$0xff]
    %v107 = vld [vmem:[#allocation5 + $0x128] sm:$0xff]
    %v108 = vld [vmem:[#allocation5 + $0x130] sm:$0xff]
    %v109 = vld [vmem:[#allocation5 + $0x138] sm:$0xff]
    %v110 = vld [vmem:[#allocation5 + $0x140] sm:$0xff]
    %v111 = vld [vmem:[#allocation5 + $0x148] sm:$0xff]
    %v112 = vld [vmem:[#allocation5 + $0x150] sm:$0xff]
    %v113 = vld [vmem:[#allocation5 + $0x158] sm:$0xff]
    %v114 = vld [vmem:[#allocation5 + $0x160] sm:$0xff]
    %v115 = vld [vmem:[#allocation5 + $0x168] sm:$0xff]
    %v116 = vld [vmem:[#allocation5 + $0x170] sm:$0xff]
    %v117 = vld [vmem:[#allocation5 + $0x178] sm:$0xff]
    %v118 = vld [vmem:[#allocation5 + $0x180] sm:$0xff]
    %v119 = vld [vmem:[#allocation5 + $0x188] sm:$0xff]
    %v120 = vld [vmem:[#allocation5 + $0x190] sm:$0xff]
    %v121 = vld [vmem:[#allocation5 + $0x198] sm:$0xff]
    %v122 = vld [vmem:[#allocation5 + $0x1a0] sm:$0xff]
    %v123 = vld [vmem:[#allocation5 + $0x1a8] sm:$0xff]
    %v124 = vld [vmem:[#allocation5 + $0x1b0] sm:$0xff]
    %v125 = vld [vmem:[#allocation5 + $0x1b8] sm:$0xff]
    %v126 = vld [vmem:[#allocation5 + $0x1c0] sm:$0xff]
    %v127 = vld [vmem:[#allocation5 + $0x1c8] sm:$0xff]
    %v128 = vld [vmem:[#allocation5 + $0x1d0] sm:$0xff]
    %v129 = vld [vmem:[#allocation5 + $0x1d8] sm:$0xff]
    %v130 = vld [vmem:[#allocation5 + $0x1e0] sm:$0xff]
    %v131 = vld [vmem:[#allocation5 + $0x1e8] sm:$0xff]
    %v132 = vld [vmem:[#allocation5 + $0x1f0] sm:$0xff]
    %v133 = vld [vmem:[#allocation5 + $0x1f8] sm:$0xff]
    %v134 = vld [vmem:[#allocation5 + $0x200] sm:$0xff]
    %v135 = vld [vmem:[#allocation5 + $0x208] sm:$0xff]
    %v136 = vld [vmem:[#allocation5 + $0x210] sm:$0xff]
    %v137 = vld [vmem:[#allocation5 + $0x218] sm:$0xff]
    %v138 = vld [vmem:[#allocation5 + $0x220] sm:$0xff]
    %v139 = vld [vmem:[#allocation5 + $0x228] sm:$0xff]
    %v140 = vld [vmem:[#allocation5 + $0x230] sm:$0xff]
    %v141 = vld [vmem:[#allocation5 + $0x238] sm:$0xff]
    %v142 = vld [vmem:[#allocation5 + $0x240] sm:$0xff]
    %v143 = vld [vmem:[#allocation5 + $0x248] sm:$0xff]
    %v144 = vld [vmem:[#allocation5 + $0x250] sm:$0xff]
    %v145 = vld [vmem:[#allocation5 + $0x258] sm:$0xff]
    %v146 = vld [vmem:[#allocation5 + $0x260] sm:$0xff]
    %v147 = vld [vmem:[#allocation5 + $0x268] sm:$0xff]
    %v148 = vld [vmem:[#allocation5 + $0x270] sm:$0xff]
    %v149 = vld [vmem:[#allocation5 + $0x278] sm:$0xff]
    %v150 = vld [vmem:[#allocation5 + $0x280] sm:$0xff]
    %v151 = vld [vmem:[#allocation5 + $0x288] sm:$0xff]
    %v152 = vld [vmem:[#allocation5 + $0x290] sm:$0xff]
    %v153 = vld [vmem:[#allocation5 + $0x298] sm:$0xff]
    %v154 = vld [vmem:[#allocation5 + $0x2a0] sm:$0xff]
    %v155 = vld [vmem:[#allocation5 + $0x2a8] sm:$0xff]
    %v156 = vld [vmem:[#allocation5 + $0x2b0] sm:$0xff]
    %v157 = vld [vmem:[#allocation5 + $0x2b8] sm:$0xff]
    %v158 = vld [vmem:[#allocation5 + $0x2c0] sm:$0xff]
    %v159 = vld [vmem:[#allocation5 + $0x2c8] sm:$0xff]
    %v160 = vld [vmem:[#allocation5 + $0x2d0] sm:$0xff]
    %v161 = vld [vmem:[#allocation5 + $0x2d8] sm:$0xff]
    %v162 = vld [vmem:[#allocation5 + $0x2e0] sm:$0xff]
    %v163 = vld [vmem:[#allocation5 + $0x2e8] sm:$0xff]
    %v164 = vld [vmem:[#allocation5 + $0x2f0] sm:$0xff]
    %v165 = vld [vmem:[#allocation5 + $0x2f8] sm:$0xff]
    %v166 = vld [vmem:[#allocation5 + $0x300] sm:$0xff]
    %v167 = vld [vmem:[#allocation5 + $0x308] sm:$0xff]
    %v168 = vld [vmem:[#allocation5 + $0x310] sm:$0xff]
    %v169 = vld [vmem:[#allocation5 + $0x318] sm:$0xff]
    %v170 = vld [vmem:[#allocation5 + $0x320] sm:$0xff]
    %v171 = vld [vmem:[#allocation5 + $0x328] sm:$0xff]
    %v172 = vld [vmem:[#allocation5 + $0x330] sm:$0xff]
    %v173 = vld [vmem:[#allocation5 + $0x338] sm:$0xff]
    %v174 = vld [vmem:[#allocation5 + $0x340] sm:$0xff]
    %v175 = vld [vmem:[#allocation5 + $0x348] sm:$0xff]
    %v176 = vld [vmem:[#allocation5 + $0x350] sm:$0xff]
    %v177 = vld [vmem:[#allocation5 + $0x358] sm:$0xff]
    %v178 = vld [vmem:[#allocation5 + $0x360] sm:$0xff]
    %v179 = vld [vmem:[#allocation5 + $0x368] sm:$0xff]
    %v180 = vld [vmem:[#allocation5 + $0x370] sm:$0xff]
    %v181 = vld [vmem:[#allocation5 + $0x378] sm:$0xff]
    %v182 = vld [vmem:[#allocation5 + $0x380] sm:$0xff]
    %v183 = vld [vmem:[#allocation5 + $0x388] sm:$0xff]
    %v184 = vld [vmem:[#allocation5 + $0x390] sm:$0xff]
    %v185 = vld [vmem:[#allocation5 + $0x398] sm:$0xff]
    %v186 = vld [vmem:[#allocation5 + $0x3a0] sm:$0xff]
    %v187 = vld [vmem:[#allocation5 + $0x3a8] sm:$0xff]
    %v188 = vld [vmem:[#allocation5 + $0x3b0] sm:$0xff]
    %v189 = vld [vmem:[#allocation5 + $0x3b8] sm:$0xff]
    %v190 = vld [vmem:[#allocation5 + $0x3c0] sm:$0xff]
    %v191 = vld [vmem:[#allocation5 + $0x3c8] sm:$0xff]
    %v192 = vld [vmem:[#allocation5 + $0x3d0] sm:$0xff]
    %v193 = vld [vmem:[#allocation5 + $0x3d8] sm:$0xff]
    %v194 = vld [vmem:[#allocation5 + $0x3e0] sm:$0xff]
    %v195 = vld [vmem:[#allocation5 + $0x3e8] sm:$0xff]
    %v196 = vld [vmem:[#allocation5 + $0x3f0] sm:$0xff]
    %v197 = vld [vmem:[#allocation5 + $0x3f8] sm:$0xff]
    %v198 = vld [vmem:[#allocation5 + $0x400] sm:$0xff]
    %v199 = vld [vmem:[#allocation5 + $0x408] sm:$0xff]
    %v200 = vld [vmem:[#allocation5 + $0x410] sm:$0xff]
    %v201 = vld [vmem:[#allocation5 + $0x418] sm:$0xff]
    %v202 = vld [vmem:[#allocation5 + $0x420] sm:$0xff]
    %v203 = vld [vmem:[#allocation5 + $0x428] sm:$0xff]
    %v204 = vld [vmem:[#allocation5 + $0x430] sm:$0xff]
    %v205 = vld [vmem:[#allocation5 + $0x438] sm:$0xff]
    %v206 = vld [vmem:[#allocation5 + $0x440] sm:$0xff]
    %v207 = vld [vmem:[#allocation5 + $0x448] sm:$0xff]
    %v208 = vld [vmem:[#allocation5 + $0x450] sm:$0xff]
    %v209 = vld [vmem:[#allocation5 + $0x458] sm:$0xff]
    %v210 = vld [vmem:[#allocation5 + $0x460] sm:$0xff]
    %v211 = vld [vmem:[#allocation5 + $0x468] sm:$0xff]
    %v212 = vld [vmem:[#allocation5 + $0x470] sm:$0xff]
    %v213 = vld [vmem:[#allocation5 + $0x478] sm:$0xff]
    %v214 = vld [vmem:[#allocation5 + $0x480] sm:$0xff]
    %v215 = vld [vmem:[#allocation5 + $0x488] sm:$0xff]
    %v216 = vld [vmem:[#allocation5 + $0x490] sm:$0xff]
    %v217 = vld [vmem:[#allocation5 + $0x498] sm:$0xff]
    %v218 = vld [vmem:[#allocation5 + $0x4a0] sm:$0xff]
    %v219 = vld [vmem:[#allocation5 + $0x4a8] sm:$0xff]
    %v220 = vld [vmem:[#allocation5 + $0x4b0] sm:$0xff]
    %v221 = vld [vmem:[#allocation5 + $0x4b8] sm:$0xff]
    %v222 = vld [vmem:[#allocation5 + $0x4c0] sm:$0xff]
    %v223 = vld [vmem:[#allocation5 + $0x4c8] sm:$0xff]
    %v224 = vld [vmem:[#allocation5 + $0x4d0] sm:$0xff]
    %v225 = vld [vmem:[#allocation5 + $0x4d8] sm:$0xff]
    %v226 = vld [vmem:[#allocation5 + $0x4e0] sm:$0xff]
    %v227 = vld [vmem:[#allocation5 + $0x4e8] sm:$0xff]
    %v228 = vld [vmem:[#allocation5 + $0x4f0] sm:$0xff]
    %v229 = vld [vmem:[#allocation5 + $0x4f8] sm:$0xff]
    %v230 = vld [vmem:[#allocation5 + $0x500] sm:$0xff]
    %v231 = vld [vmem:[#allocation5 + $0x508] sm:$0xff]
    %v232 = vld [vmem:[#allocation5 + $0x510] sm:$0xff]
    %v233 = vld [vmem:[#allocation5 + $0x518] sm:$0xff]
    %v234 = vld [vmem:[#allocation5 + $0x520] sm:$0xff]
    %v235 = vld [vmem:[#allocation5 + $0x528] sm:$0xff]
    %v236 = vld [vmem:[#allocation5 + $0x530] sm:$0xff]
    %v237 = vld [vmem:[#allocation5 + $0x538] sm:$0xff]
    %v238 = vld [vmem:[#allocation5 + $0x540] sm:$0xff]
    %v239 = vld [vmem:[#allocation5 + $0x548] sm:$0xff]
    %v240 = vld [vmem:[#allocation5 + $0x550] sm:$0xff]
    %v241 = vld [vmem:[#allocation5 + $0x558] sm:$0xff]
    %v242 = vld [vmem:[#allocation5 + $0x560] sm:$0xff]
    %v243 = vld [vmem:[#allocation5 + $0x568] sm:$0xff]
    %v244 = vld [vmem:[#allocation5 + $0x570] sm:$0xff]
    %v245 = vld [vmem:[#allocation5 + $0x578] sm:$0xff]
    %v246 = vld [vmem:[#allocation5 + $0x580] sm:$0xff]
    %v247 = vld [vmem:[#allocation5 + $0x588] sm:$0xff]
    %v248 = vld [vmem:[#allocation5 + $0x590] sm:$0xff]
    %v249 = vld [vmem:[#allocation5 + $0x598] sm:$0xff]
    %v250 = vld [vmem:[#allocation5 + $0x5a0] sm:$0xff]
    %v251 = vld [vmem:[#allocation5 + $0x5a8] sm:$0xff]
    %v252 = vld [vmem:[#allocation5 + $0x5b0] sm:$0xff]
    %v253 = vld [vmem:[#allocation5 + $0x5b8] sm:$0xff]
    %v254 = vld [vmem:[#allocation5 + $0x5c0] sm:$0xff]
    %v255 = vld [vmem:[#allocation5 + $0x5c8] sm:$0xff]
    %v256 = vld [vmem:[#allocation5 + $0x5d0] sm:$0xff]
    %v257 = vld [vmem:[#allocation5 + $0x5d8] sm:$0xff]
    %v258 = vld [vmem:[#allocation5 + $0x5e0] sm:$0xff]
    %v259 = vld [vmem:[#allocation5 + $0x5e8] sm:$0xff]
    %v260 = vld [vmem:[#allocation5 + $0x5f0] sm:$0xff]
    %v261 = vld [vmem:[#allocation5 + $0x5f8] sm:$0xff]
    %v262 = vld [vmem:[#allocation5 + $0x600] sm:$0xff]
    %v263 = vld [vmem:[#allocation5 + $0x608] sm:$0xff]
    %v264 = vld [vmem:[#allocation5 + $0x610] sm:$0xff]
    %v265 = vld [vmem:[#allocation5 + $0x618] sm:$0xff]
    %v266 = vld [vmem:[#allocation5 + $0x620] sm:$0xff]
    %v267 = vld [vmem:[#allocation5 + $0x628] sm:$0xff]
    %v268 = vld [vmem:[#allocation5 + $0x630] sm:$0xff]
    %v269 = vld [vmem:[#allocation5 + $0x638] sm:$0xff]
    %v270 = vld [vmem:[#allocation5 + $0x640] sm:$0xff]
    %v271 = vld [vmem:[#allocation5 + $0x648] sm:$0xff]
    %v272 = vld [vmem:[#allocation5 + $0x650] sm:$0xff]
    %v273 = vld [vmem:[#allocation5 + $0x658] sm:$0xff]
    %v274 = vld [vmem:[#allocation5 + $0x660] sm:$0xff]
    %v275 = vld [vmem:[#allocation5 + $0x668] sm:$0xff]
    %v276 = vld [vmem:[#allocation5 + $0x670] sm:$0xff]
    %v277 = vld [vmem:[#allocation5 + $0x678] sm:$0xff]
    %v278 = vld [vmem:[#allocation5 + $0x680] sm:$0xff]
    %v279 = vld [vmem:[#allocation5 + $0x688] sm:$0xff]
    %v280 = vld [vmem:[#allocation5 + $0x690] sm:$0xff]
    %v281 = vld [vmem:[#allocation5 + $0x698] sm:$0xff]
    %v282 = vld [vmem:[#allocation5 + $0x6a0] sm:$0xff]
    %v283 = vld [vmem:[#allocation5 + $0x6a8] sm:$0xff]
    %v284 = vld [vmem:[#allocation5 + $0x6b0] sm:$0xff]
    %v285 = vld [vmem:[#allocation5 + $0x6b8] sm:$0xff]
    %v286 = vld [vmem:[#allocation5 + $0x6c0] sm:$0xff]
    %v287 = vld [vmem:[#allocation5 + $0x6c8] sm:$0xff]
    %v288 = vld [vmem:[#allocation5 + $0x6d0] sm:$0xff]
    %v289 = vld [vmem:[#allocation5 + $0x6d8] sm:$0xff]
    %v290 = vld [vmem:[#allocation5 + $0x6e0] sm:$0xff]
    %v291 = vld [vmem:[#allocation5 + $0x6e8] sm:$0xff]
    %v292 = vld [vmem:[#allocation5 + $0x6f0] sm:$0xff]
    %v293 = vld [vmem:[#allocation5 + $0x6f8] sm:$0xff]
    %v294 = vld [vmem:[#allocation5 + $0x700] sm:$0xff]
    %v295 = vld [vmem:[#allocation5 + $0x708] sm:$0xff]
    %v296 = vld [vmem:[#allocation5 + $0x710] sm:$0xff]
    %v297 = vld [vmem:[#allocation5 + $0x718] sm:$0xff]
    %v298 = vld [vmem:[#allocation5 + $0x720] sm:$0xff]
    %v299 = vld [vmem:[#allocation5 + $0x728] sm:$0xff]
    %v300 = vld [vmem:[#allocation5 + $0x730] sm:$0xff]
    %v301 = vld [vmem:[#allocation5 + $0x738] sm:$0xff]
    %v302 = vld [vmem:[#allocation5 + $0x740] sm:$0xff]
    %v303 = vld [vmem:[#allocation5 + $0x748] sm:$0xff]
    %v304 = vld [vmem:[#allocation5 + $0x750] sm:$0xff]
    %v305 = vld [vmem:[#allocation5 + $0x758] sm:$0xff]
    %v306 = vld [vmem:[#allocation5 + $0x760] sm:$0xff]
    %v307 = vld [vmem:[#allocation5 + $0x768] sm:$0xff]
    %v308 = vld [vmem:[#allocation5 + $0x770] sm:$0xff]
    %v309 = vld [vmem:[#allocation5 + $0x778] sm:$0xff]
    %v310 = vld [vmem:[#allocation5 + $0x780] sm:$0xff]
    %v311 = vld [vmem:[#allocation5 + $0x788] sm:$0xff]
    %v312 = vld [vmem:[#allocation5 + $0x790] sm:$0xff]
    %v313 = vld [vmem:[#allocation5 + $0x798] sm:$0xff]
    %v314 = vld [vmem:[#allocation5 + $0x7a0] sm:$0xff]
    %v315 = vld [vmem:[#allocation5 + $0x7a8] sm:$0xff]
    %v316 = vld [vmem:[#allocation5 + $0x7b0] sm:$0xff]
    %v317 = vld [vmem:[#allocation5 + $0x7b8] sm:$0xff]
    %v318 = vld [vmem:[#allocation5 + $0x7c0] sm:$0xff]
    %v319 = vld [vmem:[#allocation5 + $0x7c8] sm:$0xff]
    %v320 = vld [vmem:[#allocation5 + $0x7d0] sm:$0xff]
    %v321 = vld [vmem:[#allocation5 + $0x7d8] sm:$0xff]
    %v322 = vld [vmem:[#allocation5 + $0x7e0] sm:$0xff]
    %v323 = vld [vmem:[#allocation5 + $0x7e8] sm:$0xff]
    %v324 = vld [vmem:[#allocation5 + $0x7f0] sm:$0xff]
    %v325 = vld [vmem:[#allocation5 + $0x7f8] sm:$0xff]
    %v326 = vld [vmem:[#allocation5 + $0x800] sm:$0xff]
    %v327 = vld [vmem:[#allocation5 + $0x808] sm:$0xff]
    %v328 = vld [vmem:[#allocation5 + $0x810] sm:$0xff]
    %v329 = vld [vmem:[#allocation5 + $0x818] sm:$0xff]
    %v330 = vld [vmem:[#allocation5 + $0x820] sm:$0xff]
    %v331 = vld [vmem:[#allocation5 + $0x828] sm:$0xff]
    %v332 = vld [vmem:[#allocation5 + $0x830] sm:$0xff]
    %v333 = vld [vmem:[#allocation5 + $0x838] sm:$0xff]
    %v334 = vld [vmem:[#allocation5 + $0x840] sm:$0xff]
    %v335 = vld [vmem:[#allocation5 + $0x848] sm:$0xff]
    %v336 = vld [vmem:[#allocation5 + $0x850] sm:$0xff]
    %v337 = vld [vmem:[#allocation5 + $0x858] sm:$0xff]
    %v338 = vld [vmem:[#allocation5 + $0x860] sm:$0xff]
    %v339 = vld [vmem:[#allocation5 + $0x868] sm:$0xff]
    %v340 = vld [vmem:[#allocation5 + $0x870] sm:$0xff]
    %v341 = vld [vmem:[#allocation5 + $0x878] sm:$0xff]
    %v342 = vld [vmem:[#allocation5 + $0x880] sm:$0xff]
    %v343 = vld [vmem:[#allocation5 + $0x888] sm:$0xff]
    %v344 = vld [vmem:[#allocation5 + $0x890] sm:$0xff]
    %v345 = vld [vmem:[#allocation5 + $0x898] sm:$0xff]
    %v346 = vld [vmem:[#allocation5 + $0x8a0] sm:$0xff]
    %v347 = vld [vmem:[#allocation5 + $0x8a8] sm:$0xff]
    %v348 = vld [vmem:[#allocation5 + $0x8b0] sm:$0xff]
    %v349 = vld [vmem:[#allocation5 + $0x8b8] sm:$0xff]
    %v350 = vld [vmem:[#allocation5 + $0x8c0] sm:$0xff]
    %v351 = vld [vmem:[#allocation5 + $0x8c8] sm:$0xff]
    %v352 = vld [vmem:[#allocation5 + $0x8d0] sm:$0xff]
    %v353 = vld [vmem:[#allocation5 + $0x8d8] sm:$0xff]
    %v354 = vld [vmem:[#allocation5 + $0x8e0] sm:$0xff]
    %v355 = vld [vmem:[#allocation5 + $0x8e8] sm:$0xff]
    %v356 = vld [vmem:[#allocation5 + $0x8f0] sm:$0xff]
    %v357 = vld [vmem:[#allocation5 + $0x8f8] sm:$0xff]
    %v358 = vld [vmem:[#allocation5 + $0x900] sm:$0xff]
    %v359 = vld [vmem:[#allocation5 + $0x908] sm:$0xff]
    %v360 = vld [vmem:[#allocation5 + $0x910] sm:$0xff]
    %v361 = vld [vmem:[#allocation5 + $0x918] sm:$0xff]
    %v362 = vld [vmem:[#allocation5 + $0x920] sm:$0xff]
    %v363 = vld [vmem:[#allocation5 + $0x928] sm:$0xff]
    %v364 = vld [vmem:[#allocation5 + $0x930] sm:$0xff]
    %v365 = vld [vmem:[#allocation5 + $0x938] sm:$0xff]
    %v366 = vld [vmem:[#allocation5 + $0x940] sm:$0xff]
    %v367 = vld [vmem:[#allocation5 + $0x948] sm:$0xff]
    %v368 = vld [vmem:[#allocation5 + $0x950] sm:$0xff]
    %v369 = vld [vmem:[#allocation5 + $0x958] sm:$0xff]
    %v370 = vld [vmem:[#allocation5 + $0x960] sm:$0xff]
    %v371 = vld [vmem:[#allocation5 + $0x968] sm:$0xff]
    %v372 = vld [vmem:[#allocation5 + $0x970] sm:$0xff]
    %v373 = vld [vmem:[#allocation5 + $0x978] sm:$0xff]
    %v374 = vld [vmem:[#allocation5 + $0x980] sm:$0xff]
    %v375 = vld [vmem:[#allocation5 + $0x988] sm:$0xff]
    %v376 = vld [vmem:[#allocation5 + $0x990] sm:$0xff]
    %v377 = vld [vmem:[#allocation5 + $0x998] sm:$0xff]
    %v378 = vld [vmem:[#allocation5 + $0x9a0] sm:$0xff]
    %v379 = vld [vmem:[#allocation5 + $0x9a8] sm:$0xff]
    %v380 = vld [vmem:[#allocation5 + $0x9b0] sm:$0xff]
    %v381 = vld [vmem:[#allocation5 + $0x9b8] sm:$0xff]
    %v382 = vld [vmem:[#allocation5 + $0x9c0] sm:$0xff]
    %v383 = vld [vmem:[#allocation5 + $0x9c8] sm:$0xff]
    %v384 = vld [vmem:[#allocation5 + $0x9d0] sm:$0xff]
    %v385 = vld [vmem:[#allocation5 + $0x9d8] sm:$0xff]
    %v386 = vld [vmem:[#allocation5 + $0x9e0] sm:$0xff]
    %v387 = vld [vmem:[#allocation5 + $0x9e8] sm:$0xff]
    %v388 = vld [vmem:[#allocation5 + $0x9f0] sm:$0xff]
    %v389 = vld [vmem:[#allocation5 + $0x9f8] sm:$0xff]
    %v390 = vld [vmem:[#allocation5 + $0xa00] sm:$0xff]
    %v391 = vld [vmem:[#allocation5 + $0xa08] sm:$0xff]
    %v392 = vld [vmem:[#allocation5 + $0xa10] sm:$0xff]
    %v393 = vld [vmem:[#allocation5 + $0xa18] sm:$0xff]
    %v394 = vld [vmem:[#allocation5 + $0xa20] sm:$0xff]
    %v395 = vld [vmem:[#allocation5 + $0xa28] sm:$0xff]
    %v396 = vld [vmem:[#allocation5 + $0xa30] sm:$0xff]
    %v397 = vld [vmem:[#allocation5 + $0xa38] sm:$0xff]
    %v398 = vld [vmem:[#allocation5 + $0xa40] sm:$0xff]
    %v399 = vld [vmem:[#allocation5 + $0xa48] sm:$0xff]
    %v400 = vld [vmem:[#allocation5 + $0xa50] sm:$0xff]
    %v401 = vld [vmem:[#allocation5 + $0xa58] sm:$0xff]
    %v402 = vld [vmem:[#allocation5 + $0xa60] sm:$0xff]
    %v403 = vld [vmem:[#allocation5 + $0xa68] sm:$0xff]
    %v404 = vld [vmem:[#allocation5 + $0xa70] sm:$0xff]
    %v405 = vld [vmem:[#allocation5 + $0xa78] sm:$0xff]
    %v406 = vld [vmem:[#allocation5 + $0xa80] sm:$0xff]
    %v407 = vld [vmem:[#allocation5 + $0xa88] sm:$0xff]
    %v408 = vld [vmem:[#allocation5 + $0xa90] sm:$0xff]
    %v409 = vld [vmem:[#allocation5 + $0xa98] sm:$0xff]
    %v410 = vld [vmem:[#allocation5 + $0xaa0] sm:$0xff]
    %v411 = vld [vmem:[#allocation5 + $0xaa8] sm:$0xff]
    %v412 = vld [vmem:[#allocation5 + $0xab0] sm:$0xff]
    %v413 = vld [vmem:[#allocation5 + $0xab8] sm:$0xff]
    %v414 = vld [vmem:[#allocation5 + $0xac0] sm:$0xff]
    %v415 = vld [vmem:[#allocation5 + $0xac8] sm:$0xff]
    %v416 = vld [vmem:[#allocation5 + $0xad0] sm:$0xff]
    %v417 = vld [vmem:[#allocation5 + $0xad8] sm:$0xff]
    %v418 = vld [vmem:[#allocation5 + $0xae0] sm:$0xff]
    %v419 = vld [vmem:[#allocation5 + $0xae8] sm:$0xff]
    %v420 = vld [vmem:[#allocation5 + $0xaf0] sm:$0xff]
    %v421 = vld [vmem:[#allocation5 + $0xaf8] sm:$0xff]
    %v422 = vld [vmem:[#allocation5 + $0xb00] sm:$0xff]
    %v423 = vld [vmem:[#allocation5 + $0xb08] sm:$0xff]
    %v424 = vld [vmem:[#allocation5 + $0xb10] sm:$0xff]
    %v425 = vld [vmem:[#allocation5 + $0xb18] sm:$0xff]
    %v426 = vld [vmem:[#allocation5 + $0xb20] sm:$0xff]
    %v427 = vld [vmem:[#allocation5 + $0xb28] sm:$0xff]
    %v428 = vld [vmem:[#allocation5 + $0xb30] sm:$0xff]
    %v429 = vld [vmem:[#allocation5 + $0xb38] sm:$0xff]
    %v430 = vld [vmem:[#allocation5 + $0xb40] sm:$0xff]
    %v431 = vld [vmem:[#allocation5 + $0xb48] sm:$0xff]
    %v432 = vld [vmem:[#allocation5 + $0xb50] sm:$0xff]
    %v433 = vld [vmem:[#allocation5 + $0xb58] sm:$0xff]
    %v434 = vld [vmem:[#allocation5 + $0xb60] sm:$0xff]
    %v435 = vld [vmem:[#allocation5 + $0xb68] sm:$0xff]
    %v436 = vld [vmem:[#allocation5 + $0xb70] sm:$0xff]
    %v437 = vld [vmem:[#allocation5 + $0xb78] sm:$0xff]
    %v438 = vld [vmem:[#allocation5 + $0xb80] sm:$0xff]
    %v439 = vld [vmem:[#allocation5 + $0xb88] sm:$0xff]
    %v440 = vld [vmem:[#allocation5 + $0xb90] sm:$0xff]
    %v441 = vld [vmem:[#allocation5 + $0xb98] sm:$0xff]
    %v442 = vld [vmem:[#allocation5 + $0xba0] sm:$0xff]
    %v443 = vld [vmem:[#allocation5 + $0xba8] sm:$0xff]
    %v444 = vld [vmem:[#allocation5 + $0xbb0] sm:$0xff]
    %v445 = vld [vmem:[#allocation5 + $0xbb8] sm:$0xff]
    %v446 = vld [vmem:[#allocation5 + $0xbc0] sm:$0xff]
    %v447 = vld [vmem:[#allocation5 + $0xbc8] sm:$0xff]
    %v448 = vld [vmem:[#allocation5 + $0xbd0] sm:$0xff]
    %v449 = vld [vmem:[#allocation5 + $0xbd8] sm:$0xff]
    %v450 = vld [vmem:[#allocation5 + $0xbe0] sm:$0xff]
    %v451 = vld [vmem:[#allocation5 + $0xbe8] sm:$0xff]
    %v452 = vld [vmem:[#allocation5 + $0xbf0] sm:$0xff]
    %v453 = vld [vmem:[#allocation5 + $0xbf8] sm:$0xff]
    %v454 = vld [vmem:[#allocation7] sm:$0x3f]
    %v456 = vlaneseq
    %v457 = vshrl.u32 %v456, 7
    %v458 = vsub.s32 0, %v457
    %v459 = vrot.slane %v454, %v458
    %v460 = vlaneseq
    %v461 = vshrl.u32 %v460, 7
    %v462 = vsub.s32 1, %v461
    %v463 = vrot.slane %v454, %v462
    %v464 = vlaneseq
    %v465 = vshrl.u32 %v464, 7
    %v466 = vsub.s32 2, %v465
    %v467 = vrot.slane %v454, %v466
    %v468 = vlaneseq
    %v469 = vshrl.u32 %v468, 7
    %v470 = vsub.s32 3, %v469
    %v471 = vrot.slane %v454, %v470
    %v472 = vlaneseq
    %v473 = vshrl.u32 %v472, 7
    %v474 = vsub.s32 4, %v473
    %v475 = vrot.slane %v454, %v474
    %v476 = vlaneseq
    %v477 = vshrl.u32 %v476, 7
    %v478 = vsub.s32 5, %v477
    %v479 = vrot.slane %v454, %v478
    %v502 = vunpack.c.l.b16 %v54
    %v503 = vunpack.c.h.b16 %v54
    %v504 = vunpack.c.l.b16 %v55
    %v505 = vunpack.c.h.b16 %v55
    %v506 = vunpack.c.l.b16 %v56
    %v507 = vunpack.c.h.b16 %v56
    %v508 = vunpack.c.l.b16 %v57
    %v509 = vunpack.c.h.b16 %v57
    %v510 = vunpack.c.l.b16 %v58
    %v511 = vunpack.c.h.b16 %v58
    %v512 = vunpack.c.l.b16 %v59
    %v513 = vunpack.c.h.b16 %v59
    %v514 = vunpack.c.l.b16 %v60
    %v515 = vunpack.c.h.b16 %v60
    %v516 = vunpack.c.l.b16 %v61
    %v517 = vunpack.c.h.b16 %v61
    %v518 = vunpack.c.l.b16 %v62
    %v519 = vunpack.c.h.b16 %v62
    %v520 = vunpack.c.l.b16 %v63
    %v521 = vunpack.c.h.b16 %v63
    %v522 = vunpack.c.l.b16 %v64
    %v523 = vunpack.c.h.b16 %v64
    %v524 = vunpack.c.l.b16 %v65
    %v525 = vunpack.c.h.b16 %v65
    %v526 = vunpack.c.l.b16 %v66
    %v527 = vunpack.c.h.b16 %v66
    %v528 = vunpack.c.l.b16 %v67
    %v529 = vunpack.c.h.b16 %v67
    %v530 = vunpack.c.l.b16 %v68
    %v531 = vunpack.c.h.b16 %v68
    %v532 = vunpack.c.l.b16 %v69
    %v533 = vunpack.c.h.b16 %v69
    %v534 = vpack.c.b16 %v510, %v502
    %v535 = vpack.c.b16 %v511, %v503
    %v536 = vpack.c.b16 %v512, %v504
    %v537 = vpack.c.b16 %v513, %v505
    %v538 = vpack.c.b16 %v514, %v506
    %v539 = vpack.c.b16 %v515, %v507
    %v540 = vpack.c.b16 %v516, %v508
    %v541 = vpack.c.b16 %v517, %v509
    %v542 = vpack.c.b16 %v526, %v518
    %v543 = vpack.c.b16 %v527, %v519
    %v544 = vpack.c.b16 %v528, %v520
    %v545 = vpack.c.b16 %v529, %v521
    %v546 = vpack.c.b16 %v530, %v522
    %v547 = vpack.c.b16 %v531, %v523
    %v548 = vpack.c.b16 %v532, %v524
    %v549 = vpack.c.b16 %v533, %v525
    %v950 = vunpack.c.l.b16 %v70
    %v951 = vunpack.c.h.b16 %v70
    %v952 = vunpack.c.l.b16 %v71
    %v953 = vunpack.c.h.b16 %v71
    %v954 = vunpack.c.l.b16 %v72
    %v955 = vunpack.c.h.b16 %v72
    %v956 = vunpack.c.l.b16 %v73
    %v957 = vunpack.c.h.b16 %v73
    %v958 = vunpack.c.l.b16 %v74
    %v959 = vunpack.c.h.b16 %v74
    %v960 = vunpack.c.l.b16 %v75
    %v961 = vunpack.c.h.b16 %v75
    %v962 = vunpack.c.l.b16 %v76
    %v963 = vunpack.c.h.b16 %v76
    %v964 = vunpack.c.l.b16 %v77
    %v965 = vunpack.c.h.b16 %v77
    %v966 = vunpack.c.l.b16 %v78
    %v967 = vunpack.c.h.b16 %v78
    %v968 = vunpack.c.l.b16 %v79
    %v969 = vunpack.c.h.b16 %v79
    %v970 = vunpack.c.l.b16 %v80
    %v971 = vunpack.c.h.b16 %v80
    %v972 = vunpack.c.l.b16 %v81
    %v973 = vunpack.c.h.b16 %v81
    %v974 = vunpack.c.l.b16 %v82
    %v975 = vunpack.c.h.b16 %v82
    %v976 = vunpack.c.l.b16 %v83
    %v977 = vunpack.c.h.b16 %v83
    %v978 = vunpack.c.l.b16 %v84
    %v979 = vunpack.c.h.b16 %v84
    %v980 = vunpack.c.l.b16 %v85
    %v981 = vunpack.c.h.b16 %v85
    %v982 = vunpack.c.l.b16 %v86
    %v983 = vunpack.c.h.b16 %v86
    %v984 = vunpack.c.l.b16 %v87
    %v985 = vunpack.c.h.b16 %v87
    %v986 = vunpack.c.l.b16 %v88
    %v987 = vunpack.c.h.b16 %v88
    %v988 = vunpack.c.l.b16 %v89
    %v989 = vunpack.c.h.b16 %v89
    %v990 = vunpack.c.l.b16 %v90
    %v991 = vunpack.c.h.b16 %v90
    %v992 = vunpack.c.l.b16 %v91
    %v993 = vunpack.c.h.b16 %v91
    %v994 = vunpack.c.l.b16 %v92
    %v995 = vunpack.c.h.b16 %v92
    %v996 = vunpack.c.l.b16 %v93
    %v997 = vunpack.c.h.b16 %v93
    %v998 = vunpack.c.l.b16 %v94
    %v999 = vunpack.c.h.b16 %v94
    %v1000 = vunpack.c.l.b16 %v95
    %v1001 = vunpack.c.h.b16 %v95
    %v1002 = vunpack.c.l.b16 %v96
    %v1003 = vunpack.c.h.b16 %v96
    %v1004 = vunpack.c.l.b16 %v97
    %v1005 = vunpack.c.h.b16 %v97
    %v1006 = vunpack.c.l.b16 %v98
    %v1007 = vunpack.c.h.b16 %v98
    %v1008 = vunpack.c.l.b16 %v99
    %v1009 = vunpack.c.h.b16 %v99
    %v1010 = vunpack.c.l.b16 %v100
    %v1011 = vunpack.c.h.b16 %v100
    %v1012 = vunpack.c.l.b16 %v101
    %v1013 = vunpack.c.h.b16 %v101
    %v1014 = vunpack.c.l.b16 %v102
    %v1015 = vunpack.c.h.b16 %v102
    %v1016 = vunpack.c.l.b16 %v103
    %v1017 = vunpack.c.h.b16 %v103
    %v1018 = vunpack.c.l.b16 %v104
    %v1019 = vunpack.c.h.b16 %v104
    %v1020 = vunpack.c.l.b16 %v105
    %v1021 = vunpack.c.h.b16 %v105
    %v1022 = vunpack.c.l.b16 %v106
    %v1023 = vunpack.c.h.b16 %v106
    %v1024 = vunpack.c.l.b16 %v107
    %v1025 = vunpack.c.h.b16 %v107
    %v1026 = vunpack.c.l.b16 %v108
    %v1027 = vunpack.c.h.b16 %v108
    %v1028 = vunpack.c.l.b16 %v109
    %v1029 = vunpack.c.h.b16 %v109
    %v1030 = vunpack.c.l.b16 %v110
    %v1031 = vunpack.c.h.b16 %v110
    %v1032 = vunpack.c.l.b16 %v111
    %v1033 = vunpack.c.h.b16 %v111
    %v1034 = vunpack.c.l.b16 %v112
    %v1035 = vunpack.c.h.b16 %v112
    %v1036 = vunpack.c.l.b16 %v113
    %v1037 = vunpack.c.h.b16 %v113
    %v1038 = vunpack.c.l.b16 %v114
    %v1039 = vunpack.c.h.b16 %v114
    %v1040 = vunpack.c.l.b16 %v115
    %v1041 = vunpack.c.h.b16 %v115
    %v1042 = vunpack.c.l.b16 %v116
    %v1043 = vunpack.c.h.b16 %v116
    %v1044 = vunpack.c.l.b16 %v117
    %v1045 = vunpack.c.h.b16 %v117
    %v1046 = vunpack.c.l.b16 %v118
    %v1047 = vunpack.c.h.b16 %v118
    %v1048 = vunpack.c.l.b16 %v119
    %v1049 = vunpack.c.h.b16 %v119
    %v1050 = vunpack.c.l.b16 %v120
    %v1051 = vunpack.c.h.b16 %v120
    %v1052 = vunpack.c.l.b16 %v121
    %v1053 = vunpack.c.h.b16 %v121
    %v1054 = vunpack.c.l.b16 %v122
    %v1055 = vunpack.c.h.b16 %v122
    %v1056 = vunpack.c.l.b16 %v123
    %v1057 = vunpack.c.h.b16 %v123
    %v1058 = vunpack.c.l.b16 %v124
    %v1059 = vunpack.c.h.b16 %v124
    %v1060 = vunpack.c.l.b16 %v125
    %v1061 = vunpack.c.h.b16 %v125
    %v1062 = vunpack.c.l.b16 %v126
    %v1063 = vunpack.c.h.b16 %v126
    %v1064 = vunpack.c.l.b16 %v127
    %v1065 = vunpack.c.h.b16 %v127
    %v1066 = vunpack.c.l.b16 %v128
    %v1067 = vunpack.c.h.b16 %v128
    %v1068 = vunpack.c.l.b16 %v129
    %v1069 = vunpack.c.h.b16 %v129
    %v1070 = vunpack.c.l.b16 %v130
    %v1071 = vunpack.c.h.b16 %v130
    %v1072 = vunpack.c.l.b16 %v131
    %v1073 = vunpack.c.h.b16 %v131
    %v1074 = vunpack.c.l.b16 %v132
    %v1075 = vunpack.c.h.b16 %v132
    %v1076 = vunpack.c.l.b16 %v133
    %v1077 = vunpack.c.h.b16 %v133
    %v1078 = vunpack.c.l.b16 %v134
    %v1079 = vunpack.c.h.b16 %v134
    %v1080 = vunpack.c.l.b16 %v135
    %v1081 = vunpack.c.h.b16 %v135
    %v1082 = vunpack.c.l.b16 %v136
    %v1083 = vunpack.c.h.b16 %v136
    %v1084 = vunpack.c.l.b16 %v137
    %v1085 = vunpack.c.h.b16 %v137
    %v1086 = vunpack.c.l.b16 %v138
    %v1087 = vunpack.c.h.b16 %v138
    %v1088 = vunpack.c.l.b16 %v139
    %v1089 = vunpack.c.h.b16 %v139
    %v1090 = vunpack.c.l.b16 %v140
    %v1091 = vunpack.c.h.b16 %v140
    %v1092 = vunpack.c.l.b16 %v141
    %v1093 = vunpack.c.h.b16 %v141
    %v1094 = vunpack.c.l.b16 %v142
    %v1095 = vunpack.c.h.b16 %v142
    %v1096 = vunpack.c.l.b16 %v143
    %v1097 = vunpack.c.h.b16 %v143
    %v1098 = vunpack.c.l.b16 %v144
    %v1099 = vunpack.c.h.b16 %v144
    %v1100 = vunpack.c.l.b16 %v145
    %v1101 = vunpack.c.h.b16 %v145
    %v1102 = vunpack.c.l.b16 %v146
    %v1103 = vunpack.c.h.b16 %v146
    %v1104 = vunpack.c.l.b16 %v147
    %v1105 = vunpack.c.h.b16 %v147
    %v1106 = vunpack.c.l.b16 %v148
    %v1107 = vunpack.c.h.b16 %v148
    %v1108 = vunpack.c.l.b16 %v149
    %v1109 = vunpack.c.h.b16 %v149
    %v1110 = vunpack.c.l.b16 %v150
    %v1111 = vunpack.c.h.b16 %v150
    %v1112 = vunpack.c.l.b16 %v151
    %v1113 = vunpack.c.h.b16 %v151
    %v1114 = vunpack.c.l.b16 %v152
    %v1115 = vunpack.c.h.b16 %v152
    %v1116 = vunpack.c.l.b16 %v153
    %v1117 = vunpack.c.h.b16 %v153
    %v1118 = vunpack.c.l.b16 %v154
    %v1119 = vunpack.c.h.b16 %v154
    %v1120 = vunpack.c.l.b16 %v155
    %v1121 = vunpack.c.h.b16 %v155
    %v1122 = vunpack.c.l.b16 %v156
    %v1123 = vunpack.c.h.b16 %v156
    %v1124 = vunpack.c.l.b16 %v157
    %v1125 = vunpack.c.h.b16 %v157
    %v1126 = vunpack.c.l.b16 %v158
    %v1127 = vunpack.c.h.b16 %v158
    %v1128 = vunpack.c.l.b16 %v159
    %v1129 = vunpack.c.h.b16 %v159
    %v1130 = vunpack.c.l.b16 %v160
    %v1131 = vunpack.c.h.b16 %v160
    %v1132 = vunpack.c.l.b16 %v161
    %v1133 = vunpack.c.h.b16 %v161
    %v1134 = vunpack.c.l.b16 %v162
    %v1135 = vunpack.c.h.b16 %v162
    %v1136 = vunpack.c.l.b16 %v163
    %v1137 = vunpack.c.h.b16 %v163
    %v1138 = vunpack.c.l.b16 %v164
    %v1139 = vunpack.c.h.b16 %v164
    %v1140 = vunpack.c.l.b16 %v165
    %v1141 = vunpack.c.h.b16 %v165
    %v1142 = vunpack.c.l.b16 %v166
    %v1143 = vunpack.c.h.b16 %v166
    %v1144 = vunpack.c.l.b16 %v167
    %v1145 = vunpack.c.h.b16 %v167
    %v1146 = vunpack.c.l.b16 %v168
    %v1147 = vunpack.c.h.b16 %v168
    %v1148 = vunpack.c.l.b16 %v169
    %v1149 = vunpack.c.h.b16 %v169
    %v1150 = vunpack.c.l.b16 %v170
    %v1151 = vunpack.c.h.b16 %v170
    %v1152 = vunpack.c.l.b16 %v171
    %v1153 = vunpack.c.h.b16 %v171
    %v1154 = vunpack.c.l.b16 %v172
    %v1155 = vunpack.c.h.b16 %v172
    %v1156 = vunpack.c.l.b16 %v173
    %v1157 = vunpack.c.h.b16 %v173
    %v1158 = vunpack.c.l.b16 %v174
    %v1159 = vunpack.c.h.b16 %v174
    %v1160 = vunpack.c.l.b16 %v175
    %v1161 = vunpack.c.h.b16 %v175
    %v1162 = vunpack.c.l.b16 %v176
    %v1163 = vunpack.c.h.b16 %v176
    %v1164 = vunpack.c.l.b16 %v177
    %v1165 = vunpack.c.h.b16 %v177
    %v1166 = vunpack.c.l.b16 %v178
    %v1167 = vunpack.c.h.b16 %v178
    %v1168 = vunpack.c.l.b16 %v179
    %v1169 = vunpack.c.h.b16 %v179
    %v1170 = vunpack.c.l.b16 %v180
    %v1171 = vunpack.c.h.b16 %v180
    %v1172 = vunpack.c.l.b16 %v181
    %v1173 = vunpack.c.h.b16 %v181
    %v1174 = vunpack.c.l.b16 %v182
    %v1175 = vunpack.c.h.b16 %v182
    %v1176 = vunpack.c.l.b16 %v183
    %v1177 = vunpack.c.h.b16 %v183
    %v1178 = vunpack.c.l.b16 %v184
    %v1179 = vunpack.c.h.b16 %v184
    %v1180 = vunpack.c.l.b16 %v185
    %v1181 = vunpack.c.h.b16 %v185
    %v1182 = vunpack.c.l.b16 %v186
    %v1183 = vunpack.c.h.b16 %v186
    %v1184 = vunpack.c.l.b16 %v187
    %v1185 = vunpack.c.h.b16 %v187
    %v1186 = vunpack.c.l.b16 %v188
    %v1187 = vunpack.c.h.b16 %v188
    %v1188 = vunpack.c.l.b16 %v189
    %v1189 = vunpack.c.h.b16 %v189
    %v1190 = vunpack.c.l.b16 %v190
    %v1191 = vunpack.c.h.b16 %v190
    %v1192 = vunpack.c.l.b16 %v191
    %v1193 = vunpack.c.h.b16 %v191
    %v1194 = vunpack.c.l.b16 %v192
    %v1195 = vunpack.c.h.b16 %v192
    %v1196 = vunpack.c.l.b16 %v193
    %v1197 = vunpack.c.h.b16 %v193
    %v1198 = vunpack.c.l.b16 %v194
    %v1199 = vunpack.c.h.b16 %v194
    %v1200 = vunpack.c.l.b16 %v195
    %v1201 = vunpack.c.h.b16 %v195
    %v1202 = vunpack.c.l.b16 %v196
    %v1203 = vunpack.c.h.b16 %v196
    %v1204 = vunpack.c.l.b16 %v197
    %v1205 = vunpack.c.h.b16 %v197
    %v1206 = vunpack.c.l.b16 %v198
    %v1207 = vunpack.c.h.b16 %v198
    %v1208 = vunpack.c.l.b16 %v199
    %v1209 = vunpack.c.h.b16 %v199
    %v1210 = vunpack.c.l.b16 %v200
    %v1211 = vunpack.c.h.b16 %v200
    %v1212 = vunpack.c.l.b16 %v201
    %v1213 = vunpack.c.h.b16 %v201
    %v1214 = vunpack.c.l.b16 %v202
    %v1215 = vunpack.c.h.b16 %v202
    %v1216 = vunpack.c.l.b16 %v203
    %v1217 = vunpack.c.h.b16 %v203
    %v1218 = vunpack.c.l.b16 %v204
    %v1219 = vunpack.c.h.b16 %v204
    %v1220 = vunpack.c.l.b16 %v205
    %v1221 = vunpack.c.h.b16 %v205
    %v1222 = vunpack.c.l.b16 %v206
    %v1223 = vunpack.c.h.b16 %v206
    %v1224 = vunpack.c.l.b16 %v207
    %v1225 = vunpack.c.h.b16 %v207
    %v1226 = vunpack.c.l.b16 %v208
    %v1227 = vunpack.c.h.b16 %v208
    %v1228 = vunpack.c.l.b16 %v209
    %v1229 = vunpack.c.h.b16 %v209
    %v1230 = vunpack.c.l.b16 %v210
    %v1231 = vunpack.c.h.b16 %v210
    %v1232 = vunpack.c.l.b16 %v211
    %v1233 = vunpack.c.h.b16 %v211
    %v1234 = vunpack.c.l.b16 %v212
    %v1235 = vunpack.c.h.b16 %v212
    %v1236 = vunpack.c.l.b16 %v213
    %v1237 = vunpack.c.h.b16 %v213
    %v1238 = vunpack.c.l.b16 %v214
    %v1239 = vunpack.c.h.b16 %v214
    %v1240 = vunpack.c.l.b16 %v215
    %v1241 = vunpack.c.h.b16 %v215
    %v1242 = vunpack.c.l.b16 %v216
    %v1243 = vunpack.c.h.b16 %v216
    %v1244 = vunpack.c.l.b16 %v217
    %v1245 = vunpack.c.h.b16 %v217
    %v1246 = vunpack.c.l.b16 %v218
    %v1247 = vunpack.c.h.b16 %v218
    %v1248 = vunpack.c.l.b16 %v219
    %v1249 = vunpack.c.h.b16 %v219
    %v1250 = vunpack.c.l.b16 %v220
    %v1251 = vunpack.c.h.b16 %v220
    %v1252 = vunpack.c.l.b16 %v221
    %v1253 = vunpack.c.h.b16 %v221
    %v1254 = vunpack.c.l.b16 %v222
    %v1255 = vunpack.c.h.b16 %v222
    %v1256 = vunpack.c.l.b16 %v223
    %v1257 = vunpack.c.h.b16 %v223
    %v1258 = vunpack.c.l.b16 %v224
    %v1259 = vunpack.c.h.b16 %v224
    %v1260 = vunpack.c.l.b16 %v225
    %v1261 = vunpack.c.h.b16 %v225
    %v1262 = vunpack.c.l.b16 %v226
    %v1263 = vunpack.c.h.b16 %v226
    %v1264 = vunpack.c.l.b16 %v227
    %v1265 = vunpack.c.h.b16 %v227
    %v1266 = vunpack.c.l.b16 %v228
    %v1267 = vunpack.c.h.b16 %v228
    %v1268 = vunpack.c.l.b16 %v229
    %v1269 = vunpack.c.h.b16 %v229
    %v1270 = vunpack.c.l.b16 %v230
    %v1271 = vunpack.c.h.b16 %v230
    %v1272 = vunpack.c.l.b16 %v231
    %v1273 = vunpack.c.h.b16 %v231
    %v1274 = vunpack.c.l.b16 %v232
    %v1275 = vunpack.c.h.b16 %v232
    %v1276 = vunpack.c.l.b16 %v233
    %v1277 = vunpack.c.h.b16 %v233
    %v1278 = vunpack.c.l.b16 %v234
    %v1279 = vunpack.c.h.b16 %v234
    %v1280 = vunpack.c.l.b16 %v235
    %v1281 = vunpack.c.h.b16 %v235
    %v1282 = vunpack.c.l.b16 %v236
    %v1283 = vunpack.c.h.b16 %v236
    %v1284 = vunpack.c.l.b16 %v237
    %v1285 = vunpack.c.h.b16 %v237
    %v1286 = vunpack.c.l.b16 %v238
    %v1287 = vunpack.c.h.b16 %v238
    %v1288 = vunpack.c.l.b16 %v239
    %v1289 = vunpack.c.h.b16 %v239
    %v1290 = vunpack.c.l.b16 %v240
    %v1291 = vunpack.c.h.b16 %v240
    %v1292 = vunpack.c.l.b16 %v241
    %v1293 = vunpack.c.h.b16 %v241
    %v1294 = vunpack.c.l.b16 %v242
    %v1295 = vunpack.c.h.b16 %v242
    %v1296 = vunpack.c.l.b16 %v243
    %v1297 = vunpack.c.h.b16 %v243
    %v1298 = vunpack.c.l.b16 %v244
    %v1299 = vunpack.c.h.b16 %v244
    %v1300 = vunpack.c.l.b16 %v245
    %v1301 = vunpack.c.h.b16 %v245
    %v1302 = vunpack.c.l.b16 %v246
    %v1303 = vunpack.c.h.b16 %v246
    %v1304 = vunpack.c.l.b16 %v247
    %v1305 = vunpack.c.h.b16 %v247
    %v1306 = vunpack.c.l.b16 %v248
    %v1307 = vunpack.c.h.b16 %v248
    %v1308 = vunpack.c.l.b16 %v249
    %v1309 = vunpack.c.h.b16 %v249
    %v1310 = vunpack.c.l.b16 %v250
    %v1311 = vunpack.c.h.b16 %v250
    %v1312 = vunpack.c.l.b16 %v251
    %v1313 = vunpack.c.h.b16 %v251
    %v1314 = vunpack.c.l.b16 %v252
    %v1315 = vunpack.c.h.b16 %v252
    %v1316 = vunpack.c.l.b16 %v253
    %v1317 = vunpack.c.h.b16 %v253
    %v1318 = vunpack.c.l.b16 %v254
    %v1319 = vunpack.c.h.b16 %v254
    %v1320 = vunpack.c.l.b16 %v255
    %v1321 = vunpack.c.h.b16 %v255
    %v1322 = vunpack.c.l.b16 %v256
    %v1323 = vunpack.c.h.b16 %v256
    %v1324 = vunpack.c.l.b16 %v257
    %v1325 = vunpack.c.h.b16 %v257
    %v1326 = vunpack.c.l.b16 %v258
    %v1327 = vunpack.c.h.b16 %v258
    %v1328 = vunpack.c.l.b16 %v259
    %v1329 = vunpack.c.h.b16 %v259
    %v1330 = vunpack.c.l.b16 %v260
    %v1331 = vunpack.c.h.b16 %v260
    %v1332 = vunpack.c.l.b16 %v261
    %v1333 = vunpack.c.h.b16 %v261
    %v1334 = vunpack.c.l.b16 %v262
    %v1335 = vunpack.c.h.b16 %v262
    %v1336 = vunpack.c.l.b16 %v263
    %v1337 = vunpack.c.h.b16 %v263
    %v1338 = vunpack.c.l.b16 %v264
    %v1339 = vunpack.c.h.b16 %v264
    %v1340 = vunpack.c.l.b16 %v265
    %v1341 = vunpack.c.h.b16 %v265
    %v1342 = vunpack.c.l.b16 %v266
    %v1343 = vunpack.c.h.b16 %v266
    %v1344 = vunpack.c.l.b16 %v267
    %v1345 = vunpack.c.h.b16 %v267
    %v1346 = vunpack.c.l.b16 %v268
    %v1347 = vunpack.c.h.b16 %v268
    %v1348 = vunpack.c.l.b16 %v269
    %v1349 = vunpack.c.h.b16 %v269
    %v1350 = vunpack.c.l.b16 %v270
    %v1351 = vunpack.c.h.b16 %v270
    %v1352 = vunpack.c.l.b16 %v271
    %v1353 = vunpack.c.h.b16 %v271
    %v1354 = vunpack.c.l.b16 %v272
    %v1355 = vunpack.c.h.b16 %v272
    %v1356 = vunpack.c.l.b16 %v273
    %v1357 = vunpack.c.h.b16 %v273
    %v1358 = vunpack.c.l.b16 %v274
    %v1359 = vunpack.c.h.b16 %v274
    %v1360 = vunpack.c.l.b16 %v275
    %v1361 = vunpack.c.h.b16 %v275
    %v1362 = vunpack.c.l.b16 %v276
    %v1363 = vunpack.c.h.b16 %v276
    %v1364 = vunpack.c.l.b16 %v277
    %v1365 = vunpack.c.h.b16 %v277
    %v1366 = vunpack.c.l.b16 %v278
    %v1367 = vunpack.c.h.b16 %v278
    %v1368 = vunpack.c.l.b16 %v279
    %v1369 = vunpack.c.h.b16 %v279
    %v1370 = vunpack.c.l.b16 %v280
    %v1371 = vunpack.c.h.b16 %v280
    %v1372 = vunpack.c.l.b16 %v281
    %v1373 = vunpack.c.h.b16 %v281
    %v1374 = vunpack.c.l.b16 %v282
    %v1375 = vunpack.c.h.b16 %v282
    %v1376 = vunpack.c.l.b16 %v283
    %v1377 = vunpack.c.h.b16 %v283
    %v1378 = vunpack.c.l.b16 %v284
    %v1379 = vunpack.c.h.b16 %v284
    %v1380 = vunpack.c.l.b16 %v285
    %v1381 = vunpack.c.h.b16 %v285
    %v1382 = vunpack.c.l.b16 %v286
    %v1383 = vunpack.c.h.b16 %v286
    %v1384 = vunpack.c.l.b16 %v287
    %v1385 = vunpack.c.h.b16 %v287
    %v1386 = vunpack.c.l.b16 %v288
    %v1387 = vunpack.c.h.b16 %v288
    %v1388 = vunpack.c.l.b16 %v289
    %v1389 = vunpack.c.h.b16 %v289
    %v1390 = vunpack.c.l.b16 %v290
    %v1391 = vunpack.c.h.b16 %v290
    %v1392 = vunpack.c.l.b16 %v291
    %v1393 = vunpack.c.h.b16 %v291
    %v1394 = vunpack.c.l.b16 %v292
    %v1395 = vunpack.c.h.b16 %v292
    %v1396 = vunpack.c.l.b16 %v293
    %v1397 = vunpack.c.h.b16 %v293
    %v1398 = vunpack.c.l.b16 %v294
    %v1399 = vunpack.c.h.b16 %v294
    %v1400 = vunpack.c.l.b16 %v295
    %v1401 = vunpack.c.h.b16 %v295
    %v1402 = vunpack.c.l.b16 %v296
    %v1403 = vunpack.c.h.b16 %v296
    %v1404 = vunpack.c.l.b16 %v297
    %v1405 = vunpack.c.h.b16 %v297
    %v1406 = vunpack.c.l.b16 %v298
    %v1407 = vunpack.c.h.b16 %v298
    %v1408 = vunpack.c.l.b16 %v299
    %v1409 = vunpack.c.h.b16 %v299
    %v1410 = vunpack.c.l.b16 %v300
    %v1411 = vunpack.c.h.b16 %v300
    %v1412 = vunpack.c.l.b16 %v301
    %v1413 = vunpack.c.h.b16 %v301
    %v1414 = vunpack.c.l.b16 %v302
    %v1415 = vunpack.c.h.b16 %v302
    %v1416 = vunpack.c.l.b16 %v303
    %v1417 = vunpack.c.h.b16 %v303
    %v1418 = vunpack.c.l.b16 %v304
    %v1419 = vunpack.c.h.b16 %v304
    %v1420 = vunpack.c.l.b16 %v305
    %v1421 = vunpack.c.h.b16 %v305
    %v1422 = vunpack.c.l.b16 %v306
    %v1423 = vunpack.c.h.b16 %v306
    %v1424 = vunpack.c.l.b16 %v307
    %v1425 = vunpack.c.h.b16 %v307
    %v1426 = vunpack.c.l.b16 %v308
    %v1427 = vunpack.c.h.b16 %v308
    %v1428 = vunpack.c.l.b16 %v309
    %v1429 = vunpack.c.h.b16 %v309
    %v1430 = vunpack.c.l.b16 %v310
    %v1431 = vunpack.c.h.b16 %v310
    %v1432 = vunpack.c.l.b16 %v311
    %v1433 = vunpack.c.h.b16 %v311
    %v1434 = vunpack.c.l.b16 %v312
    %v1435 = vunpack.c.h.b16 %v312
    %v1436 = vunpack.c.l.b16 %v313
    %v1437 = vunpack.c.h.b16 %v313
    %v1438 = vunpack.c.l.b16 %v314
    %v1439 = vunpack.c.h.b16 %v314
    %v1440 = vunpack.c.l.b16 %v315
    %v1441 = vunpack.c.h.b16 %v315
    %v1442 = vunpack.c.l.b16 %v316
    %v1443 = vunpack.c.h.b16 %v316
    %v1444 = vunpack.c.l.b16 %v317
    %v1445 = vunpack.c.h.b16 %v317
    %v1446 = vunpack.c.l.b16 %v318
    %v1447 = vunpack.c.h.b16 %v318
    %v1448 = vunpack.c.l.b16 %v319
    %v1449 = vunpack.c.h.b16 %v319
    %v1450 = vunpack.c.l.b16 %v320
    %v1451 = vunpack.c.h.b16 %v320
    %v1452 = vunpack.c.l.b16 %v321
    %v1453 = vunpack.c.h.b16 %v321
    %v1454 = vunpack.c.l.b16 %v322
    %v1455 = vunpack.c.h.b16 %v322
    %v1456 = vunpack.c.l.b16 %v323
    %v1457 = vunpack.c.h.b16 %v323
    %v1458 = vunpack.c.l.b16 %v324
    %v1459 = vunpack.c.h.b16 %v324
    %v1460 = vunpack.c.l.b16 %v325
    %v1461 = vunpack.c.h.b16 %v325
    %v1462 = vunpack.c.l.b16 %v326
    %v1463 = vunpack.c.h.b16 %v326
    %v1464 = vunpack.c.l.b16 %v327
    %v1465 = vunpack.c.h.b16 %v327
    %v1466 = vunpack.c.l.b16 %v328
    %v1467 = vunpack.c.h.b16 %v328
    %v1468 = vunpack.c.l.b16 %v329
    %v1469 = vunpack.c.h.b16 %v329
    %v1470 = vunpack.c.l.b16 %v330
    %v1471 = vunpack.c.h.b16 %v330
    %v1472 = vunpack.c.l.b16 %v331
    %v1473 = vunpack.c.h.b16 %v331
    %v1474 = vunpack.c.l.b16 %v332
    %v1475 = vunpack.c.h.b16 %v332
    %v1476 = vunpack.c.l.b16 %v333
    %v1477 = vunpack.c.h.b16 %v333
    %v1478 = vunpack.c.l.b16 %v334
    %v1479 = vunpack.c.h.b16 %v334
    %v1480 = vunpack.c.l.b16 %v335
    %v1481 = vunpack.c.h.b16 %v335
    %v1482 = vunpack.c.l.b16 %v336
    %v1483 = vunpack.c.h.b16 %v336
    %v1484 = vunpack.c.l.b16 %v337
    %v1485 = vunpack.c.h.b16 %v337
    %v1486 = vunpack.c.l.b16 %v338
    %v1487 = vunpack.c.h.b16 %v338
    %v1488 = vunpack.c.l.b16 %v339
    %v1489 = vunpack.c.h.b16 %v339
    %v1490 = vunpack.c.l.b16 %v340
    %v1491 = vunpack.c.h.b16 %v340
    %v1492 = vunpack.c.l.b16 %v341
    %v1493 = vunpack.c.h.b16 %v341
    %v1494 = vunpack.c.l.b16 %v342
    %v1495 = vunpack.c.h.b16 %v342
    %v1496 = vunpack.c.l.b16 %v343
    %v1497 = vunpack.c.h.b16 %v343
    %v1498 = vunpack.c.l.b16 %v344
    %v1499 = vunpack.c.h.b16 %v344
    %v1500 = vunpack.c.l.b16 %v345
    %v1501 = vunpack.c.h.b16 %v345
    %v1502 = vunpack.c.l.b16 %v346
    %v1503 = vunpack.c.h.b16 %v346
    %v1504 = vunpack.c.l.b16 %v347
    %v1505 = vunpack.c.h.b16 %v347
    %v1506 = vunpack.c.l.b16 %v348
    %v1507 = vunpack.c.h.b16 %v348
    %v1508 = vunpack.c.l.b16 %v349
    %v1509 = vunpack.c.h.b16 %v349
    %v1510 = vunpack.c.l.b16 %v350
    %v1511 = vunpack.c.h.b16 %v350
    %v1512 = vunpack.c.l.b16 %v351
    %v1513 = vunpack.c.h.b16 %v351
    %v1514 = vunpack.c.l.b16 %v352
    %v1515 = vunpack.c.h.b16 %v352
    %v1516 = vunpack.c.l.b16 %v353
    %v1517 = vunpack.c.h.b16 %v353
    %v1518 = vunpack.c.l.b16 %v354
    %v1519 = vunpack.c.h.b16 %v354
    %v1520 = vunpack.c.l.b16 %v355
    %v1521 = vunpack.c.h.b16 %v355
    %v1522 = vunpack.c.l.b16 %v356
    %v1523 = vunpack.c.h.b16 %v356
    %v1524 = vunpack.c.l.b16 %v357
    %v1525 = vunpack.c.h.b16 %v357
    %v1526 = vunpack.c.l.b16 %v358
    %v1527 = vunpack.c.h.b16 %v358
    %v1528 = vunpack.c.l.b16 %v359
    %v1529 = vunpack.c.h.b16 %v359
    %v1530 = vunpack.c.l.b16 %v360
    %v1531 = vunpack.c.h.b16 %v360
    %v1532 = vunpack.c.l.b16 %v361
    %v1533 = vunpack.c.h.b16 %v361
    %v1534 = vunpack.c.l.b16 %v362
    %v1535 = vunpack.c.h.b16 %v362
    %v1536 = vunpack.c.l.b16 %v363
    %v1537 = vunpack.c.h.b16 %v363
    %v1538 = vunpack.c.l.b16 %v364
    %v1539 = vunpack.c.h.b16 %v364
    %v1540 = vunpack.c.l.b16 %v365
    %v1541 = vunpack.c.h.b16 %v365
    %v1542 = vunpack.c.l.b16 %v366
    %v1543 = vunpack.c.h.b16 %v366
    %v1544 = vunpack.c.l.b16 %v367
    %v1545 = vunpack.c.h.b16 %v367
    %v1546 = vunpack.c.l.b16 %v368
    %v1547 = vunpack.c.h.b16 %v368
    %v1548 = vunpack.c.l.b16 %v369
    %v1549 = vunpack.c.h.b16 %v369
    %v1550 = vunpack.c.l.b16 %v370
    %v1551 = vunpack.c.h.b16 %v370
    %v1552 = vunpack.c.l.b16 %v371
    %v1553 = vunpack.c.h.b16 %v371
    %v1554 = vunpack.c.l.b16 %v372
    %v1555 = vunpack.c.h.b16 %v372
    %v1556 = vunpack.c.l.b16 %v373
    %v1557 = vunpack.c.h.b16 %v373
    %v1558 = vunpack.c.l.b16 %v374
    %v1559 = vunpack.c.h.b16 %v374
    %v1560 = vunpack.c.l.b16 %v375
    %v1561 = vunpack.c.h.b16 %v375
    %v1562 = vunpack.c.l.b16 %v376
    %v1563 = vunpack.c.h.b16 %v376
    %v1564 = vunpack.c.l.b16 %v377
    %v1565 = vunpack.c.h.b16 %v377
    %v1566 = vunpack.c.l.b16 %v378
    %v1567 = vunpack.c.h.b16 %v378
    %v1568 = vunpack.c.l.b16 %v379
    %v1569 = vunpack.c.h.b16 %v379
    %v1570 = vunpack.c.l.b16 %v380
    %v1571 = vunpack.c.h.b16 %v380
    %v1572 = vunpack.c.l.b16 %v381
    %v1573 = vunpack.c.h.b16 %v381
    %v1574 = vunpack.c.l.b16 %v382
    %v1575 = vunpack.c.h.b16 %v382
    %v1576 = vunpack.c.l.b16 %v383
    %v1577 = vunpack.c.h.b16 %v383
    %v1578 = vunpack.c.l.b16 %v384
    %v1579 = vunpack.c.h.b16 %v384
    %v1580 = vunpack.c.l.b16 %v385
    %v1581 = vunpack.c.h.b16 %v385
    %v1582 = vunpack.c.l.b16 %v386
    %v1583 = vunpack.c.h.b16 %v386
    %v1584 = vunpack.c.l.b16 %v387
    %v1585 = vunpack.c.h.b16 %v387
    %v1586 = vunpack.c.l.b16 %v388
    %v1587 = vunpack.c.h.b16 %v388
    %v1588 = vunpack.c.l.b16 %v389
    %v1589 = vunpack.c.h.b16 %v389
    %v1590 = vunpack.c.l.b16 %v390
    %v1591 = vunpack.c.h.b16 %v390
    %v1592 = vunpack.c.l.b16 %v391
    %v1593 = vunpack.c.h.b16 %v391
    %v1594 = vunpack.c.l.b16 %v392
    %v1595 = vunpack.c.h.b16 %v392
    %v1596 = vunpack.c.l.b16 %v393
    %v1597 = vunpack.c.h.b16 %v393
    %v1598 = vunpack.c.l.b16 %v394
    %v1599 = vunpack.c.h.b16 %v394
    %v1600 = vunpack.c.l.b16 %v395
    %v1601 = vunpack.c.h.b16 %v395
    %v1602 = vunpack.c.l.b16 %v396
    %v1603 = vunpack.c.h.b16 %v396
    %v1604 = vunpack.c.l.b16 %v397
    %v1605 = vunpack.c.h.b16 %v397
    %v1606 = vunpack.c.l.b16 %v398
    %v1607 = vunpack.c.h.b16 %v398
    %v1608 = vunpack.c.l.b16 %v399
    %v1609 = vunpack.c.h.b16 %v399
    %v1610 = vunpack.c.l.b16 %v400
    %v1611 = vunpack.c.h.b16 %v400
    %v1612 = vunpack.c.l.b16 %v401
    %v1613 = vunpack.c.h.b16 %v401
    %v1614 = vunpack.c.l.b16 %v402
    %v1615 = vunpack.c.h.b16 %v402
    %v1616 = vunpack.c.l.b16 %v403
    %v1617 = vunpack.c.h.b16 %v403
    %v1618 = vunpack.c.l.b16 %v404
    %v1619 = vunpack.c.h.b16 %v404
    %v1620 = vunpack.c.l.b16 %v405
    %v1621 = vunpack.c.h.b16 %v405
    %v1622 = vunpack.c.l.b16 %v406
    %v1623 = vunpack.c.h.b16 %v406
    %v1624 = vunpack.c.l.b16 %v407
    %v1625 = vunpack.c.h.b16 %v407
    %v1626 = vunpack.c.l.b16 %v408
    %v1627 = vunpack.c.h.b16 %v408
    %v1628 = vunpack.c.l.b16 %v409
    %v1629 = vunpack.c.h.b16 %v409
    %v1630 = vunpack.c.l.b16 %v410
    %v1631 = vunpack.c.h.b16 %v410
    %v1632 = vunpack.c.l.b16 %v411
    %v1633 = vunpack.c.h.b16 %v411
    %v1634 = vunpack.c.l.b16 %v412
    %v1635 = vunpack.c.h.b16 %v412
    %v1636 = vunpack.c.l.b16 %v413
    %v1637 = vunpack.c.h.b16 %v413
    %v1638 = vunpack.c.l.b16 %v414
    %v1639 = vunpack.c.h.b16 %v414
    %v1640 = vunpack.c.l.b16 %v415
    %v1641 = vunpack.c.h.b16 %v415
    %v1642 = vunpack.c.l.b16 %v416
    %v1643 = vunpack.c.h.b16 %v416
    %v1644 = vunpack.c.l.b16 %v417
    %v1645 = vunpack.c.h.b16 %v417
    %v1646 = vunpack.c.l.b16 %v418
    %v1647 = vunpack.c.h.b16 %v418
    %v1648 = vunpack.c.l.b16 %v419
    %v1649 = vunpack.c.h.b16 %v419
    %v1650 = vunpack.c.l.b16 %v420
    %v1651 = vunpack.c.h.b16 %v420
    %v1652 = vunpack.c.l.b16 %v421
    %v1653 = vunpack.c.h.b16 %v421
    %v1654 = vunpack.c.l.b16 %v422
    %v1655 = vunpack.c.h.b16 %v422
    %v1656 = vunpack.c.l.b16 %v423
    %v1657 = vunpack.c.h.b16 %v423
    %v1658 = vunpack.c.l.b16 %v424
    %v1659 = vunpack.c.h.b16 %v424
    %v1660 = vunpack.c.l.b16 %v425
    %v1661 = vunpack.c.h.b16 %v425
    %v1662 = vunpack.c.l.b16 %v426
    %v1663 = vunpack.c.h.b16 %v426
    %v1664 = vunpack.c.l.b16 %v427
    %v1665 = vunpack.c.h.b16 %v427
    %v1666 = vunpack.c.l.b16 %v428
    %v1667 = vunpack.c.h.b16 %v428
    %v1668 = vunpack.c.l.b16 %v429
    %v1669 = vunpack.c.h.b16 %v429
    %v1670 = vunpack.c.l.b16 %v430
    %v1671 = vunpack.c.h.b16 %v430
    %v1672 = vunpack.c.l.b16 %v431
    %v1673 = vunpack.c.h.b16 %v431
    %v1674 = vunpack.c.l.b16 %v432
    %v1675 = vunpack.c.h.b16 %v432
    %v1676 = vunpack.c.l.b16 %v433
    %v1677 = vunpack.c.h.b16 %v433
    %v1678 = vunpack.c.l.b16 %v434
    %v1679 = vunpack.c.h.b16 %v434
    %v1680 = vunpack.c.l.b16 %v435
    %v1681 = vunpack.c.h.b16 %v435
    %v1682 = vunpack.c.l.b16 %v436
    %v1683 = vunpack.c.h.b16 %v436
    %v1684 = vunpack.c.l.b16 %v437
    %v1685 = vunpack.c.h.b16 %v437
    %v1686 = vunpack.c.l.b16 %v438
    %v1687 = vunpack.c.h.b16 %v438
    %v1688 = vunpack.c.l.b16 %v439
    %v1689 = vunpack.c.h.b16 %v439
    %v1690 = vunpack.c.l.b16 %v440
    %v1691 = vunpack.c.h.b16 %v440
    %v1692 = vunpack.c.l.b16 %v441
    %v1693 = vunpack.c.h.b16 %v441
    %v1694 = vunpack.c.l.b16 %v442
    %v1695 = vunpack.c.h.b16 %v442
    %v1696 = vunpack.c.l.b16 %v443
    %v1697 = vunpack.c.h.b16 %v443
    %v1698 = vunpack.c.l.b16 %v444
    %v1699 = vunpack.c.h.b16 %v444
    %v1700 = vunpack.c.l.b16 %v445
    %v1701 = vunpack.c.h.b16 %v445
    %v1702 = vunpack.c.l.b16 %v446
    %v1703 = vunpack.c.h.b16 %v446
    %v1704 = vunpack.c.l.b16 %v447
    %v1705 = vunpack.c.h.b16 %v447
    %v1706 = vunpack.c.l.b16 %v448
    %v1707 = vunpack.c.h.b16 %v448
    %v1708 = vunpack.c.l.b16 %v449
    %v1709 = vunpack.c.h.b16 %v449
    %v1710 = vunpack.c.l.b16 %v450
    %v1711 = vunpack.c.h.b16 %v450
    %v1712 = vunpack.c.l.b16 %v451
    %v1713 = vunpack.c.h.b16 %v451
    %v1714 = vunpack.c.l.b16 %v452
    %v1715 = vunpack.c.h.b16 %v452
    %v1716 = vunpack.c.l.b16 %v453
    %v1717 = vunpack.c.h.b16 %v453
    %v1718 = vpack.c.b16 %v956, %v950
    %v1719 = vpack.c.b16 %v957, %v951
    %v1720 = vpack.c.b16 %v958, %v952
    %v1721 = vpack.c.b16 %v959, %v953
    %v1722 = vpack.c.b16 %v960, %v954
    %v1723 = vpack.c.b16 %v961, %v955
    %v1724 = vpack.c.b16 %v968, %v962
    %v1725 = vpack.c.b16 %v969, %v963
    %v1726 = vpack.c.b16 %v970, %v964
    %v1727 = vpack.c.b16 %v971, %v965
    %v1728 = vpack.c.b16 %v972, %v966
    %v1729 = vpack.c.b16 %v973, %v967
    %v1730 = vpack.c.b16 %v980, %v974
    %v1731 = vpack.c.b16 %v981, %v975
    %v1732 = vpack.c.b16 %v982, %v976
    %v1733 = vpack.c.b16 %v983, %v977
    %v1734 = vpack.c.b16 %v984, %v978
    %v1735 = vpack.c.b16 %v985, %v979
    %v1736 = vpack.c.b16 %v992, %v986
    %v1737 = vpack.c.b16 %v993, %v987
    %v1738 = vpack.c.b16 %v994, %v988
    %v1739 = vpack.c.b16 %v995, %v989
    %v1740 = vpack.c.b16 %v996, %v990
    %v1741 = vpack.c.b16 %v997, %v991
    %v1742 = vpack.c.b16 %v1004, %v998
    %v1743 = vpack.c.b16 %v1005, %v999
    %v1744 = vpack.c.b16 %v1006, %v1000
    %v1745 = vpack.c.b16 %v1007, %v1001
    %v1746 = vpack.c.b16 %v1008, %v1002
    %v1747 = vpack.c.b16 %v1009, %v1003
    %v1748 = vpack.c.b16 %v1016, %v1010
    %v1749 = vpack.c.b16 %v1017, %v1011
    %v1750 = vpack.c.b16 %v1018, %v1012
    %v1751 = vpack.c.b16 %v1019, %v1013
    %v1752 = vpack.c.b16 %v1020, %v1014
    %v1753 = vpack.c.b16 %v1021, %v1015
    %v1754 = vpack.c.b16 %v1028, %v1022
    %v1755 = vpack.c.b16 %v1029, %v1023
    %v1756 = vpack.c.b16 %v1030, %v1024
    %v1757 = vpack.c.b16 %v1031, %v1025
    %v1758 = vpack.c.b16 %v1032, %v1026
    %v1759 = vpack.c.b16 %v1033, %v1027
    %v1760 = vpack.c.b16 %v1040, %v1034
    %v1761 = vpack.c.b16 %v1041, %v1035
    %v1762 = vpack.c.b16 %v1042, %v1036
    %v1763 = vpack.c.b16 %v1043, %v1037
    %v1764 = vpack.c.b16 %v1044, %v1038
    %v1765 = vpack.c.b16 %v1045, %v1039
    %v1766 = vpack.c.b16 %v1052, %v1046
    %v1767 = vpack.c.b16 %v1053, %v1047
    %v1768 = vpack.c.b16 %v1054, %v1048
    %v1769 = vpack.c.b16 %v1055, %v1049
    %v1770 = vpack.c.b16 %v1056, %v1050
    %v1771 = vpack.c.b16 %v1057, %v1051
    %v1772 = vpack.c.b16 %v1064, %v1058
    %v1773 = vpack.c.b16 %v1065, %v1059
    %v1774 = vpack.c.b16 %v1066, %v1060
    %v1775 = vpack.c.b16 %v1067, %v1061
    %v1776 = vpack.c.b16 %v1068, %v1062
    %v1777 = vpack.c.b16 %v1069, %v1063
    %v1778 = vpack.c.b16 %v1076, %v1070
    %v1779 = vpack.c.b16 %v1077, %v1071
    %v1780 = vpack.c.b16 %v1078, %v1072
    %v1781 = vpack.c.b16 %v1079, %v1073
    %v1782 = vpack.c.b16 %v1080, %v1074
    %v1783 = vpack.c.b16 %v1081, %v1075
    %v1784 = vpack.c.b16 %v1088, %v1082
    %v1785 = vpack.c.b16 %v1089, %v1083
    %v1786 = vpack.c.b16 %v1090, %v1084
    %v1787 = vpack.c.b16 %v1091, %v1085
    %v1788 = vpack.c.b16 %v1092, %v1086
    %v1789 = vpack.c.b16 %v1093, %v1087
    %v1790 = vpack.c.b16 %v1100, %v1094
    %v1791 = vpack.c.b16 %v1101, %v1095
    %v1792 = vpack.c.b16 %v1102, %v1096
    %v1793 = vpack.c.b16 %v1103, %v1097
    %v1794 = vpack.c.b16 %v1104, %v1098
    %v1795 = vpack.c.b16 %v1105, %v1099
    %v1796 = vpack.c.b16 %v1112, %v1106
    %v1797 = vpack.c.b16 %v1113, %v1107
    %v1798 = vpack.c.b16 %v1114, %v1108
    %v1799 = vpack.c.b16 %v1115, %v1109
    %v1800 = vpack.c.b16 %v1116, %v1110
    %v1801 = vpack.c.b16 %v1117, %v1111
    %v1802 = vpack.c.b16 %v1124, %v1118
    %v1803 = vpack.c.b16 %v1125, %v1119
    %v1804 = vpack.c.b16 %v1126, %v1120
    %v1805 = vpack.c.b16 %v1127, %v1121
    %v1806 = vpack.c.b16 %v1128, %v1122
    %v1807 = vpack.c.b16 %v1129, %v1123
    %v1808 = vpack.c.b16 %v1136, %v1130
    %v1809 = vpack.c.b16 %v1137, %v1131
    %v1810 = vpack.c.b16 %v1138, %v1132
    %v1811 = vpack.c.b16 %v1139, %v1133
    %v1812 = vpack.c.b16 %v1140, %v1134
    %v1813 = vpack.c.b16 %v1141, %v1135
    %v1814 = vpack.c.b16 %v1148, %v1142
    %v1815 = vpack.c.b16 %v1149, %v1143
    %v1816 = vpack.c.b16 %v1150, %v1144
    %v1817 = vpack.c.b16 %v1151, %v1145
    %v1818 = vpack.c.b16 %v1152, %v1146
    %v1819 = vpack.c.b16 %v1153, %v1147
    %v1820 = vpack.c.b16 %v1160, %v1154
    %v1821 = vpack.c.b16 %v1161, %v1155
    %v1822 = vpack.c.b16 %v1162, %v1156
    %v1823 = vpack.c.b16 %v1163, %v1157
    %v1824 = vpack.c.b16 %v1164, %v1158
    %v1825 = vpack.c.b16 %v1165, %v1159
    %v1826 = vpack.c.b16 %v1172, %v1166
    %v1827 = vpack.c.b16 %v1173, %v1167
    %v1828 = vpack.c.b16 %v1174, %v1168
    %v1829 = vpack.c.b16 %v1175, %v1169
    %v1830 = vpack.c.b16 %v1176, %v1170
    %v1831 = vpack.c.b16 %v1177, %v1171
    %v1832 = vpack.c.b16 %v1184, %v1178
    %v1833 = vpack.c.b16 %v1185, %v1179
    %v1834 = vpack.c.b16 %v1186, %v1180
    %v1835 = vpack.c.b16 %v1187, %v1181
    %v1836 = vpack.c.b16 %v1188, %v1182
    %v1837 = vpack.c.b16 %v1189, %v1183
    %v1838 = vpack.c.b16 %v1196, %v1190
    %v1839 = vpack.c.b16 %v1197, %v1191
    %v1840 = vpack.c.b16 %v1198, %v1192
    %v1841 = vpack.c.b16 %v1199, %v1193
    %v1842 = vpack.c.b16 %v1200, %v1194
    %v1843 = vpack.c.b16 %v1201, %v1195
    %v1844 = vpack.c.b16 %v1208, %v1202
    %v1845 = vpack.c.b16 %v1209, %v1203
    %v1846 = vpack.c.b16 %v1210, %v1204
    %v1847 = vpack.c.b16 %v1211, %v1205
    %v1848 = vpack.c.b16 %v1212, %v1206
    %v1849 = vpack.c.b16 %v1213, %v1207
    %v1850 = vpack.c.b16 %v1220, %v1214
    %v1851 = vpack.c.b16 %v1221, %v1215
    %v1852 = vpack.c.b16 %v1222, %v1216
    %v1853 = vpack.c.b16 %v1223, %v1217
    %v1854 = vpack.c.b16 %v1224, %v1218
    %v1855 = vpack.c.b16 %v1225, %v1219
    %v1856 = vpack.c.b16 %v1232, %v1226
    %v1857 = vpack.c.b16 %v1233, %v1227
    %v1858 = vpack.c.b16 %v1234, %v1228
    %v1859 = vpack.c.b16 %v1235, %v1229
    %v1860 = vpack.c.b16 %v1236, %v1230
    %v1861 = vpack.c.b16 %v1237, %v1231
    %v1862 = vpack.c.b16 %v1244, %v1238
    %v1863 = vpack.c.b16 %v1245, %v1239
    %v1864 = vpack.c.b16 %v1246, %v1240
    %v1865 = vpack.c.b16 %v1247, %v1241
    %v1866 = vpack.c.b16 %v1248, %v1242
    %v1867 = vpack.c.b16 %v1249, %v1243
    %v1868 = vpack.c.b16 %v1256, %v1250
    %v1869 = vpack.c.b16 %v1257, %v1251
    %v1870 = vpack.c.b16 %v1258, %v1252
    %v1871 = vpack.c.b16 %v1259, %v1253
    %v1872 = vpack.c.b16 %v1260, %v1254
    %v1873 = vpack.c.b16 %v1261, %v1255
    %v1874 = vpack.c.b16 %v1268, %v1262
    %v1875 = vpack.c.b16 %v1269, %v1263
    %v1876 = vpack.c.b16 %v1270, %v1264
    %v1877 = vpack.c.b16 %v1271, %v1265
    %v1878 = vpack.c.b16 %v1272, %v1266
    %v1879 = vpack.c.b16 %v1273, %v1267
    %v1880 = vpack.c.b16 %v1280, %v1274
    %v1881 = vpack.c.b16 %v1281, %v1275
    %v1882 = vpack.c.b16 %v1282, %v1276
    %v1883 = vpack.c.b16 %v1283, %v1277
    %v1884 = vpack.c.b16 %v1284, %v1278
    %v1885 = vpack.c.b16 %v1285, %v1279
    %v1886 = vpack.c.b16 %v1292, %v1286
    %v1887 = vpack.c.b16 %v1293, %v1287
    %v1888 = vpack.c.b16 %v1294, %v1288
    %v1889 = vpack.c.b16 %v1295, %v1289
    %v1890 = vpack.c.b16 %v1296, %v1290
    %v1891 = vpack.c.b16 %v1297, %v1291
    %v1892 = vpack.c.b16 %v1304, %v1298
    %v1893 = vpack.c.b16 %v1305, %v1299
    %v1894 = vpack.c.b16 %v1306, %v1300
    %v1895 = vpack.c.b16 %v1307, %v1301
    %v1896 = vpack.c.b16 %v1308, %v1302
    %v1897 = vpack.c.b16 %v1309, %v1303
    %v1898 = vpack.c.b16 %v1316, %v1310
    %v1899 = vpack.c.b16 %v1317, %v1311
    %v1900 = vpack.c.b16 %v1318, %v1312
    %v1901 = vpack.c.b16 %v1319, %v1313
    %v1902 = vpack.c.b16 %v1320, %v1314
    %v1903 = vpack.c.b16 %v1321, %v1315
    %v1904 = vpack.c.b16 %v1328, %v1322
    %v1905 = vpack.c.b16 %v1329, %v1323
    %v1906 = vpack.c.b16 %v1330, %v1324
    %v1907 = vpack.c.b16 %v1331, %v1325
    %v1908 = vpack.c.b16 %v1332, %v1326
    %v1909 = vpack.c.b16 %v1333, %v1327
    %v1910 = vpack.c.b16 %v1340, %v1334
    %v1911 = vpack.c.b16 %v1341, %v1335
    %v1912 = vpack.c.b16 %v1342, %v1336
    %v1913 = vpack.c.b16 %v1343, %v1337
    %v1914 = vpack.c.b16 %v1344, %v1338
    %v1915 = vpack.c.b16 %v1345, %v1339
    %v1916 = vpack.c.b16 %v1352, %v1346
    %v1917 = vpack.c.b16 %v1353, %v1347
    %v1918 = vpack.c.b16 %v1354, %v1348
    %v1919 = vpack.c.b16 %v1355, %v1349
    %v1920 = vpack.c.b16 %v1356, %v1350
    %v1921 = vpack.c.b16 %v1357, %v1351
    %v1922 = vpack.c.b16 %v1364, %v1358
    %v1923 = vpack.c.b16 %v1365, %v1359
    %v1924 = vpack.c.b16 %v1366, %v1360
    %v1925 = vpack.c.b16 %v1367, %v1361
    %v1926 = vpack.c.b16 %v1368, %v1362
    %v1927 = vpack.c.b16 %v1369, %v1363
    %v1928 = vpack.c.b16 %v1376, %v1370
    %v1929 = vpack.c.b16 %v1377, %v1371
    %v1930 = vpack.c.b16 %v1378, %v1372
    %v1931 = vpack.c.b16 %v1379, %v1373
    %v1932 = vpack.c.b16 %v1380, %v1374
    %v1933 = vpack.c.b16 %v1381, %v1375
    %v1934 = vpack.c.b16 %v1388, %v1382
    %v1935 = vpack.c.b16 %v1389, %v1383
    %v1936 = vpack.c.b16 %v1390, %v1384
    %v1937 = vpack.c.b16 %v1391, %v1385
    %v1938 = vpack.c.b16 %v1392, %v1386
    %v1939 = vpack.c.b16 %v1393, %v1387
    %v1940 = vpack.c.b16 %v1400, %v1394
    %v1941 = vpack.c.b16 %v1401, %v1395
    %v1942 = vpack.c.b16 %v1402, %v1396
    %v1943 = vpack.c.b16 %v1403, %v1397
    %v1944 = vpack.c.b16 %v1404, %v1398
    %v1945 = vpack.c.b16 %v1405, %v1399
    %v1946 = vpack.c.b16 %v1412, %v1406
    %v1947 = vpack.c.b16 %v1413, %v1407
    %v1948 = vpack.c.b16 %v1414, %v1408
    %v1949 = vpack.c.b16 %v1415, %v1409
    %v1950 = vpack.c.b16 %v1416, %v1410
    %v1951 = vpack.c.b16 %v1417, %v1411
    %v1952 = vpack.c.b16 %v1424, %v1418
    %v1953 = vpack.c.b16 %v1425, %v1419
    %v1954 = vpack.c.b16 %v1426, %v1420
    %v1955 = vpack.c.b16 %v1427, %v1421
    %v1956 = vpack.c.b16 %v1428, %v1422
    %v1957 = vpack.c.b16 %v1429, %v1423
    %v1958 = vpack.c.b16 %v1436, %v1430
    %v1959 = vpack.c.b16 %v1437, %v1431
    %v1960 = vpack.c.b16 %v1438, %v1432
    %v1961 = vpack.c.b16 %v1439, %v1433
    %v1962 = vpack.c.b16 %v1440, %v1434
    %v1963 = vpack.c.b16 %v1441, %v1435
    %v1964 = vpack.c.b16 %v1448, %v1442
    %v1965 = vpack.c.b16 %v1449, %v1443
    %v1966 = vpack.c.b16 %v1450, %v1444
    %v1967 = vpack.c.b16 %v1451, %v1445
    %v1968 = vpack.c.b16 %v1452, %v1446
    %v1969 = vpack.c.b16 %v1453, %v1447
    %v1970 = vpack.c.b16 %v1460, %v1454
    %v1971 = vpack.c.b16 %v1461, %v1455
    %v1972 = vpack.c.b16 %v1462, %v1456
    %v1973 = vpack.c.b16 %v1463, %v1457
    %v1974 = vpack.c.b16 %v1464, %v1458
    %v1975 = vpack.c.b16 %v1465, %v1459
    %v1976 = vpack.c.b16 %v1472, %v1466
    %v1977 = vpack.c.b16 %v1473, %v1467
    %v1978 = vpack.c.b16 %v1474, %v1468
    %v1979 = vpack.c.b16 %v1475, %v1469
    %v1980 = vpack.c.b16 %v1476, %v1470
    %v1981 = vpack.c.b16 %v1477, %v1471
    %v1982 = vpack.c.b16 %v1484, %v1478
    %v1983 = vpack.c.b16 %v1485, %v1479
    %v1984 = vpack.c.b16 %v1486, %v1480
    %v1985 = vpack.c.b16 %v1487, %v1481
    %v1986 = vpack.c.b16 %v1488, %v1482
    %v1987 = vpack.c.b16 %v1489, %v1483
    %v1988 = vpack.c.b16 %v1496, %v1490
    %v1989 = vpack.c.b16 %v1497, %v1491
    %v1990 = vpack.c.b16 %v1498, %v1492
    %v1991 = vpack.c.b16 %v1499, %v1493
    %v1992 = vpack.c.b16 %v1500, %v1494
    %v1993 = vpack.c.b16 %v1501, %v1495
    %v1994 = vpack.c.b16 %v1508, %v1502
    %v1995 = vpack.c.b16 %v1509, %v1503
    %v1996 = vpack.c.b16 %v1510, %v1504
    %v1997 = vpack.c.b16 %v1511, %v1505
    %v1998 = vpack.c.b16 %v1512, %v1506
    %v1999 = vpack.c.b16 %v1513, %v1507
    %v2000 = vpack.c.b16 %v1520, %v1514
    %v2001 = vpack.c.b16 %v1521, %v1515
    %v2002 = vpack.c.b16 %v1522, %v1516
    %v2003 = vpack.c.b16 %v1523, %v1517
    %v2004 = vpack.c.b16 %v1524, %v1518
    %v2005 = vpack.c.b16 %v1525, %v1519
    %v2006 = vpack.c.b16 %v1532, %v1526
    %v2007 = vpack.c.b16 %v1533, %v1527
    %v2008 = vpack.c.b16 %v1534, %v1528
    %v2009 = vpack.c.b16 %v1535, %v1529
    %v2010 = vpack.c.b16 %v1536, %v1530
    %v2011 = vpack.c.b16 %v1537, %v1531
    %v2012 = vpack.c.b16 %v1544, %v1538
    %v2013 = vpack.c.b16 %v1545, %v1539
    %v2014 = vpack.c.b16 %v1546, %v1540
    %v2015 = vpack.c.b16 %v1547, %v1541
    %v2016 = vpack.c.b16 %v1548, %v1542
    %v2017 = vpack.c.b16 %v1549, %v1543
    %v2018 = vpack.c.b16 %v1556, %v1550
    %v2019 = vpack.c.b16 %v1557, %v1551
    %v2020 = vpack.c.b16 %v1558, %v1552
    %v2021 = vpack.c.b16 %v1559, %v1553
    %v2022 = vpack.c.b16 %v1560, %v1554
    %v2023 = vpack.c.b16 %v1561, %v1555
    %v2024 = vpack.c.b16 %v1568, %v1562
    %v2025 = vpack.c.b16 %v1569, %v1563
    %v2026 = vpack.c.b16 %v1570, %v1564
    %v2027 = vpack.c.b16 %v1571, %v1565
    %v2028 = vpack.c.b16 %v1572, %v1566
    %v2029 = vpack.c.b16 %v1573, %v1567
    %v2030 = vpack.c.b16 %v1580, %v1574
    %v2031 = vpack.c.b16 %v1581, %v1575
    %v2032 = vpack.c.b16 %v1582, %v1576
    %v2033 = vpack.c.b16 %v1583, %v1577
    %v2034 = vpack.c.b16 %v1584, %v1578
    %v2035 = vpack.c.b16 %v1585, %v1579
    %v2036 = vpack.c.b16 %v1592, %v1586
    %v2037 = vpack.c.b16 %v1593, %v1587
    %v2038 = vpack.c.b16 %v1594, %v1588
    %v2039 = vpack.c.b16 %v1595, %v1589
    %v2040 = vpack.c.b16 %v1596, %v1590
    %v2041 = vpack.c.b16 %v1597, %v1591
    %v2042 = vpack.c.b16 %v1604, %v1598
    %v2043 = vpack.c.b16 %v1605, %v1599
    %v2044 = vpack.c.b16 %v1606, %v1600
    %v2045 = vpack.c.b16 %v1607, %v1601
    %v2046 = vpack.c.b16 %v1608, %v1602
    %v2047 = vpack.c.b16 %v1609, %v1603
    %v2048 = vpack.c.b16 %v1616, %v1610
    %v2049 = vpack.c.b16 %v1617, %v1611
    %v2050 = vpack.c.b16 %v1618, %v1612
    %v2051 = vpack.c.b16 %v1619, %v1613
    %v2052 = vpack.c.b16 %v1620, %v1614
    %v2053 = vpack.c.b16 %v1621, %v1615
    %v2054 = vpack.c.b16 %v1628, %v1622
    %v2055 = vpack.c.b16 %v1629, %v1623
    %v2056 = vpack.c.b16 %v1630, %v1624
    %v2057 = vpack.c.b16 %v1631, %v1625
    %v2058 = vpack.c.b16 %v1632, %v1626
    %v2059 = vpack.c.b16 %v1633, %v1627
    %v2060 = vpack.c.b16 %v1640, %v1634
    %v2061 = vpack.c.b16 %v1641, %v1635
    %v2062 = vpack.c.b16 %v1642, %v1636
    %v2063 = vpack.c.b16 %v1643, %v1637
    %v2064 = vpack.c.b16 %v1644, %v1638
    %v2065 = vpack.c.b16 %v1645, %v1639
    %v2066 = vpack.c.b16 %v1652, %v1646
    %v2067 = vpack.c.b16 %v1653, %v1647
    %v2068 = vpack.c.b16 %v1654, %v1648
    %v2069 = vpack.c.b16 %v1655, %v1649
    %v2070 = vpack.c.b16 %v1656, %v1650
    %v2071 = vpack.c.b16 %v1657, %v1651
    %v2072 = vpack.c.b16 %v1664, %v1658
    %v2073 = vpack.c.b16 %v1665, %v1659
    %v2074 = vpack.c.b16 %v1666, %v1660
    %v2075 = vpack.c.b16 %v1667, %v1661
    %v2076 = vpack.c.b16 %v1668, %v1662
    %v2077 = vpack.c.b16 %v1669, %v1663
    %v2078 = vpack.c.b16 %v1676, %v1670
    %v2079 = vpack.c.b16 %v1677, %v1671
    %v2080 = vpack.c.b16 %v1678, %v1672
    %v2081 = vpack.c.b16 %v1679, %v1673
    %v2082 = vpack.c.b16 %v1680, %v1674
    %v2083 = vpack.c.b16 %v1681, %v1675
    %v2084 = vpack.c.b16 %v1688, %v1682
    %v2085 = vpack.c.b16 %v1689, %v1683
    %v2086 = vpack.c.b16 %v1690, %v1684
    %v2087 = vpack.c.b16 %v1691, %v1685
    %v2088 = vpack.c.b16 %v1692, %v1686
    %v2089 = vpack.c.b16 %v1693, %v1687
    %v2090 = vpack.c.b16 %v1700, %v1694
    %v2091 = vpack.c.b16 %v1701, %v1695
    %v2092 = vpack.c.b16 %v1702, %v1696
    %v2093 = vpack.c.b16 %v1703, %v1697
    %v2094 = vpack.c.b16 %v1704, %v1698
    %v2095 = vpack.c.b16 %v1705, %v1699
    %v2096 = vpack.c.b16 %v1712, %v1706
    %v2097 = vpack.c.b16 %v1713, %v1707
    %v2098 = vpack.c.b16 %v1714, %v1708
    %v2099 = vpack.c.b16 %v1715, %v1709
    %v2100 = vpack.c.b16 %v1716, %v1710
    %v2101 = vpack.c.b16 %v1717, %v1711
    %2486 = vmatprep.subr.bf16.mxu0 %v1719
    %2487 = vmatpush1.bf16.msra.mxu0 %v1718
    %2488 = vmatprep.subr.bf16.mxu0 %v1725
    %2489 = vmatpush1.bf16.msra.mxu0 %v1724
    %2490 = vmatprep.subr.bf16.mxu0 %v1731
    %2491 = vmatpush1.bf16.msra.mxu0 %v1730
    %2492 = vmatprep.subr.bf16.mxu0 %v1737
    %2493 = vmatpush1.bf16.msra.mxu0 %v1736
    %2494 = vmatprep.subr.bf16.mxu0 %v1743
    %2495 = vmatpush1.bf16.msra.mxu0 %v1742
    %2496 = vmatprep.subr.bf16.mxu0 %v1749
    %2497 = vmatpush1.bf16.msra.mxu0 %v1748
    %2498 = vmatprep.subr.bf16.mxu0 %v1755
    %2499 = vmatpush1.bf16.msra.mxu0 %v1754
    %2500 = vmatprep.subr.bf16.mxu0 %v1761
    %2501 = vmatpush1.bf16.msra.mxu0 %v1760
    %2502 = vmatprep.subr.bf16.mxu0 %v1767
    %2503 = vmatpush1.bf16.msra.mxu0 %v1766
    %2504 = vmatprep.subr.bf16.mxu0 %v1773
    %2505 = vmatpush1.bf16.msra.mxu0 %v1772
    %2506 = vmatprep.subr.bf16.mxu0 %v1779
    %2507 = vmatpush1.bf16.msra.mxu0 %v1778
    %2508 = vmatprep.subr.bf16.mxu0 %v1785
    %2509 = vmatpush1.bf16.msra.mxu0 %v1784
    %2510 = vmatprep.subr.bf16.mxu0 %v1791
    %2511 = vmatpush1.bf16.msra.mxu0 %v1790
    %2512 = vmatprep.subr.bf16.mxu0 %v1797
    %2513 = vmatpush1.bf16.msra.mxu0 %v1796
    %2514 = vmatprep.subr.bf16.mxu0 %v1803
    %2515 = vmatpush1.bf16.msra.mxu0 %v1802
    %2516 = vmatprep.subr.bf16.mxu0 %v1809
    %2517 = vmatpush1.bf16.msra.mxu0 %v1808
    %2518 = vmatprep.mubr.bf16.mxu0 %v535
    %2519 = vmatmul.mubr.bf16.gmra.mrb[0].mxu0 %v534
    %v2520 = vpop.f32.mrb[0].mxu0
    %v2521 = vadd.f32 %v459, %v2520
    %v2522 = vpop.f32.mrb[0].mxu0
    %v2523 = vadd.f32 %v463, %v2522
    %v2524 = vpop.f32.mrb[0].mxu0
    %v2525 = vadd.f32 %v459, %v2524
    %v2526 = vpop.f32.mrb[0].mxu0
    %v2527 = vadd.f32 %v463, %v2526
    %2528 = vmatprep.mubr.bf16.mxu0 %v543
    %2529 = vmatmul.mubr.bf16.gmra.mrb[0].mxu0 %v542
    %v2530 = vpop.f32.mrb[0].mxu0
    %v2531 = vadd.f32 %v459, %v2530
    %v2532 = vpop.f32.mrb[0].mxu0
    %v2533 = vadd.f32 %v463, %v2532
    %v2534 = vpop.f32.mrb[0].mxu0
    %v2535 = vadd.f32 %v459, %v2534
    %v2536 = vpop.f32.mrb[0].mxu0
    %v2537 = vadd.f32 %v463, %v2536
    %2538 = vdwg.mxu0
    %2539 = vmatprep.subr.bf16.mxu0 %v1815
    %2540 = vmatpush1.bf16.msra.mxu0 %v1814
    %2541 = vmatprep.subr.bf16.mxu0 %v1821
    %2542 = vmatpush1.bf16.msra.mxu0 %v1820
    %2543 = vmatprep.subr.bf16.mxu0 %v1827
    %2544 = vmatpush1.bf16.msra.mxu0 %v1826
    %2545 = vmatprep.subr.bf16.mxu0 %v1833
    %2546 = vmatpush1.bf16.msra.mxu0 %v1832
    %2547 = vmatprep.subr.bf16.mxu0 %v1839
    %2548 = vmatpush1.bf16.msra.mxu0 %v1838
    %2549 = vmatprep.subr.bf16.mxu0 %v1845
    %2550 = vmatpush1.bf16.msra.mxu0 %v1844
    %2551 = vmatprep.subr.bf16.mxu0 %v1851
    %2552 = vmatpush1.bf16.msra.mxu0 %v1850
    %2553 = vmatprep.subr.bf16.mxu0 %v1857
    %2554 = vmatpush1.bf16.msra.mxu0 %v1856
    %2555 = vmatprep.subr.bf16.mxu0 %v1863
    %2556 = vmatpush1.bf16.msra.mxu0 %v1862
    %2557 = vmatprep.subr.bf16.mxu0 %v1869
    %2558 = vmatpush1.bf16.msra.mxu0 %v1868
    %2559 = vmatprep.subr.bf16.mxu0 %v1875
    %2560 = vmatpush1.bf16.msra.mxu0 %v1874
    %2561 = vmatprep.subr.bf16.mxu0 %v1881
    %2562 = vmatpush1.bf16.msra.mxu0 %v1880
    %2563 = vmatprep.subr.bf16.mxu0 %v1887
    %2564 = vmatpush1.bf16.msra.mxu0 %v1886
    %2565 = vmatprep.subr.bf16.mxu0 %v1893
    %2566 = vmatpush1.bf16.msra.mxu0 %v1892
    %2567 = vmatprep.subr.bf16.mxu0 %v1899
    %2568 = vmatpush1.bf16.msra.mxu0 %v1898
    %2569 = vmatprep.subr.bf16.mxu0 %v1905
    %2570 = vmatpush1.bf16.msra.mxu0 %v1904
    %2571 = vmatprep.mubr.bf16.mxu0 %v537
    %2572 = vmatmul.mubr.bf16.gmra.mrb[0].mxu0 %v536
    %v2573 = vpop.f32.mrb[0].mxu0
    %v2574 = vadd.f32 %v2521, %v2573
    %v2575 = vpop.f32.mrb[0].mxu0
    %v2576 = vadd.f32 %v2523, %v2575
    %v2577 = vpop.f32.mrb[0].mxu0
    %v2578 = vadd.f32 %v2525, %v2577
    %v2579 = vpop.f32.mrb[0].mxu0
    %v2580 = vadd.f32 %v2527, %v2579
    %2581 = vmatprep.mubr.bf16.mxu0 %v545
    %2582 = vmatmul.mubr.bf16.gmra.mrb[0].mxu0 %v544
    %v2583 = vpop.f32.mrb[0].mxu0
    %v2584 = vadd.f32 %v2531, %v2583
    %v2585 = vpop.f32.mrb[0].mxu0
    %v2586 = vadd.f32 %v2533, %v2585
    %v2587 = vpop.f32.mrb[0].mxu0
    %v2588 = vadd.f32 %v2535, %v2587
    %v2589 = vpop.f32.mrb[0].mxu0
    %v2590 = vadd.f32 %v2537, %v2589
    %2591 = vdwg.mxu0
    %2592 = vmatprep.subr.bf16.mxu0 %v1911
    %2593 = vmatpush1.bf16.msra.mxu0 %v1910
    %2594 = vmatprep.subr.bf16.mxu0 %v1917
    %2595 = vmatpush1.bf16.msra.mxu0 %v1916
    %2596 = vmatprep.subr.bf16.mxu0 %v1923
    %2597 = vmatpush1.bf16.msra.mxu0 %v1922
    %2598 = vmatprep.subr.bf16.mxu0 %v1929
    %2599 = vmatpush1.bf16.msra.mxu0 %v1928
    %2600 = vmatprep.subr.bf16.mxu0 %v1935
    %2601 = vmatpush1.bf16.msra.mxu0 %v1934
    %2602 = vmatprep.subr.bf16.mxu0 %v1941
    %2603 = vmatpush1.bf16.msra.mxu0 %v1940
    %2604 = vmatprep.subr.bf16.mxu0 %v1947
    %2605 = vmatpush1.bf16.msra.mxu0 %v1946
    %2606 = vmatprep.subr.bf16.mxu0 %v1953
    %2607 = vmatpush1.bf16.msra.mxu0 %v1952
    %2608 = vmatprep.subr.bf16.mxu0 %v1959
    %2609 = vmatpush1.bf16.msra.mxu0 %v1958
    %2610 = vmatprep.subr.bf16.mxu0 %v1965
    %2611 = vmatpush1.bf16.msra.mxu0 %v1964
    %2612 = vmatprep.subr.bf16.mxu0 %v1971
    %2613 = vmatpush1.bf16.msra.mxu0 %v1970
    %2614 = vmatprep.subr.bf16.mxu0 %v1977
    %2615 = vmatpush1.bf16.msra.mxu0 %v1976
    %2616 = vmatprep.subr.bf16.mxu0 %v1983
    %2617 = vmatpush1.bf16.msra.mxu0 %v1982
    %2618 = vmatprep.subr.bf16.mxu0 %v1989
    %2619 = vmatpush1.bf16.msra.mxu0 %v1988
    %2620 = vmatprep.subr.bf16.mxu0 %v1995
    %2621 = vmatpush1.bf16.msra.mxu0 %v1994
    %2622 = vmatprep.subr.bf16.mxu0 %v2001
    %2623 = vmatpush1.bf16.msra.mxu0 %v2000
    %2624 = vmatprep.mubr.bf16.mxu0 %v539
    %2625 = vmatmul.mubr.bf16.gmra.mrb[0].mxu0 %v538
    %v2626 = vpop.f32.mrb[0].mxu0
    %v2627 = vadd.f32 %v2574, %v2626
    %v2628 = vpop.f32.mrb[0].mxu0
    %v2629 = vadd.f32 %v2576, %v2628
    %v2630 = vpop.f32.mrb[0].mxu0
    %v2631 = vadd.f32 %v2578, %v2630
    %v2632 = vpop.f32.mrb[0].mxu0
    %v2633 = vadd.f32 %v2580, %v2632
    %2634 = vmatprep.mubr.bf16.mxu0 %v547
    %2635 = vmatmul.mubr.bf16.gmra.mrb[0].mxu0 %v546
    %v2636 = vpop.f32.mrb[0].mxu0
    %v2637 = vadd.f32 %v2584, %v2636
    %v2638 = vpop.f32.mrb[0].mxu0
    %v2639 = vadd.f32 %v2586, %v2638
    %v2640 = vpop.f32.mrb[0].mxu0
    %v2641 = vadd.f32 %v2588, %v2640
    %v2642 = vpop.f32.mrb[0].mxu0
    %v2643 = vadd.f32 %v2590, %v2642
    %2644 = vdwg.mxu0
    %2645 = vmatprep.subr.bf16.mxu0 %v2007
    %2646 = vmatpush1.bf16.msra.mxu0 %v2006
    %2647 = vmatprep.subr.bf16.mxu0 %v2013
    %2648 = vmatpush1.bf16.msra.mxu0 %v2012
    %2649 = vmatprep.subr.bf16.mxu0 %v2019
    %2650 = vmatpush1.bf16.msra.mxu0 %v2018
    %2651 = vmatprep.subr.bf16.mxu0 %v2025
    %2652 = vmatpush1.bf16.msra.mxu0 %v2024
    %2653 = vmatprep.subr.bf16.mxu0 %v2031
    %2654 = vmatpush1.bf16.msra.mxu0 %v2030
    %2655 = vmatprep.subr.bf16.mxu0 %v2037
    %2656 = vmatpush1.bf16.msra.mxu0 %v2036
    %2657 = vmatprep.subr.bf16.mxu0 %v2043
    %2658 = vmatpush1.bf16.msra.mxu0 %v2042
    %2659 = vmatprep.subr.bf16.mxu0 %v2049
    %2660 = vmatpush1.bf16.msra.mxu0 %v2048
    %2661 = vmatprep.subr.bf16.mxu0 %v2055
    %2662 = vmatpush1.bf16.msra.mxu0 %v2054
    %2663 = vmatprep.subr.bf16.mxu0 %v2061
    %2664 = vmatpush1.bf16.msra.mxu0 %v2060
    %2665 = vmatprep.subr.bf16.mxu0 %v2067
    %2666 = vmatpush1.bf16.msra.mxu0 %v2066
    %2667 = vmatprep.subr.bf16.mxu0 %v2073
    %2668 = vmatpush1.bf16.msra.mxu0 %v2072
    %2669 = vmatprep.subr.bf16.mxu0 %v2079
    %2670 = vmatpush1.bf16.msra.mxu0 %v2078
    %2671 = vmatprep.subr.bf16.mxu0 %v2085
    %2672 = vmatpush1.bf16.msra.mxu0 %v2084
    %2673 = vmatprep.subr.bf16.mxu0 %v2091
    %2674 = vmatpush1.bf16.msra.mxu0 %v2090
    %2675 = vmatprep.subr.bf16.mxu0 %v2097
    %2676 = vmatpush1.bf16.msra.mxu0 %v2096
    %2677 = vmatprep.mubr.bf16.mxu0 %v541
    %2678 = vmatmul.mubr.bf16.gmra.mrb[0].mxu0 %v540
    %v2679 = vpop.f32.mrb[0].mxu0
    %v2680 = vadd.f32 %v2627, %v2679
    %v2681 = vpop.f32.mrb[0].mxu0
    %v2682 = vadd.f32 %v2629, %v2681
    %v2683 = vpop.f32.mrb[0].mxu0
    %v2684 = vadd.f32 %v2631, %v2683
    %v2685 = vpop.f32.mrb[0].mxu0
    %v2686 = vadd.f32 %v2633, %v2685
    %2687 = vmatprep.mubr.bf16.mxu0 %v549
    %2688 = vmatmul.mubr.bf16.gmra.mrb[0].mxu0 %v548
    %v2689 = vpop.f32.mrb[0].mxu0
    %v2690 = vadd.f32 %v2637, %v2689
    %v2691 = vpop.f32.mrb[0].mxu0
    %v2692 = vadd.f32 %v2639, %v2691
    %v2693 = vpop.f32.mrb[0].mxu0
    %v2694 = vadd.f32 %v2641, %v2693
    %v2695 = vpop.f32.mrb[0].mxu0
    %v2696 = vadd.f32 %v2643, %v2695
    %2697 = vdwg.mxu0
    %2698 = vmatprep.subr.bf16.mxu0 %v1721
    %2699 = vmatpush1.bf16.msra.mxu0 %v1720
    %2700 = vmatprep.subr.bf16.mxu0 %v1727
    %2701 = vmatpush1.bf16.msra.mxu0 %v1726
    %2702 = vmatprep.subr.bf16.mxu0 %v1733
    %2703 = vmatpush1.bf16.msra.mxu0 %v1732
    %2704 = vmatprep.subr.bf16.mxu0 %v1739
    %2705 = vmatpush1.bf16.msra.mxu0 %v1738
    %2706 = vmatprep.subr.bf16.mxu0 %v1745
    %2707 = vmatpush1.bf16.msra.mxu0 %v1744
    %2708 = vmatprep.subr.bf16.mxu0 %v1751
    %2709 = vmatpush1.bf16.msra.mxu0 %v1750
    %2710 = vmatprep.subr.bf16.mxu0 %v1757
    %2711 = vmatpush1.bf16.msra.mxu0 %v1756
    %2712 = vmatprep.subr.bf16.mxu0 %v1763
    %2713 = vmatpush1.bf16.msra.mxu0 %v1762
    %2714 = vmatprep.subr.bf16.mxu0 %v1769
    %2715 = vmatpush1.bf16.msra.mxu0 %v1768
    %2716 = vmatprep.subr.bf16.mxu0 %v1775
    %2717 = vmatpush1.bf16.msra.mxu0 %v1774
    %2718 = vmatprep.subr.bf16.mxu0 %v1781
    %2719 = vmatpush1.bf16.msra.mxu0 %v1780
    %2720 = vmatprep.subr.bf16.mxu0 %v1787
    %2721 = vmatpush1.bf16.msra.mxu0 %v1786
    %2722 = vmatprep.subr.bf16.mxu0 %v1793
    %2723 = vmatpush1.bf16.msra.mxu0 %v1792
    %2724 = vmatprep.subr.bf16.mxu0 %v1799
    %2725 = vmatpush1.bf16.msra.mxu0 %v1798
    %2726 = vmatprep.subr.bf16.mxu0 %v1805
    %2727 = vmatpush1.bf16.msra.mxu0 %v1804
    %2728 = vmatprep.subr.bf16.mxu0 %v1811
    %2729 = vmatpush1.bf16.msra.mxu0 %v1810
    %2730 = vmatprep.mubr.bf16.mxu0 %v535
    %2731 = vmatmul.mubr.bf16.gmra.mrb[0].mxu0 %v534
    %v2732 = vpop.f32.mrb[0].mxu0
    %v2733 = vadd.f32 %v467, %v2732
    %v2734 = vpop.f32.mrb[0].mxu0
    %v2735 = vadd.f32 %v471, %v2734
    %v2736 = vpop.f32.mrb[0].mxu0
    %v2737 = vadd.f32 %v467, %v2736
    %v2738 = vpop.f32.mrb[0].mxu0
    %v2739 = vadd.f32 %v471, %v2738
    %2740 = vmatprep.mubr.bf16.mxu0 %v543
    %2741 = vmatmul.mubr.bf16.gmra.mrb[0].mxu0 %v542
    %v2742 = vpop.f32.mrb[0].mxu0
    %v2743 = vadd.f32 %v467, %v2742
    %v2744 = vpop.f32.mrb[0].mxu0
    %v2745 = vadd.f32 %v471, %v2744
    %v2746 = vpop.f32.mrb[0].mxu0
    %v2747 = vadd.f32 %v467, %v2746
    %v2748 = vpop.f32.mrb[0].mxu0
    %v2749 = vadd.f32 %v471, %v2748
    %2750 = vdwg.mxu0
    %2751 = vmatprep.subr.bf16.mxu0 %v1817
    %2752 = vmatpush1.bf16.msra.mxu0 %v1816
    %2753 = vmatprep.subr.bf16.mxu0 %v1823
    %2754 = vmatpush1.bf16.msra.mxu0 %v1822
    %2755 = vmatprep.subr.bf16.mxu0 %v1829
    %2756 = vmatpush1.bf16.msra.mxu0 %v1828
    %2757 = vmatprep.subr.bf16.mxu0 %v1835
    %2758 = vmatpush1.bf16.msra.mxu0 %v1834
    %2759 = vmatprep.subr.bf16.mxu0 %v1841
    %2760 = vmatpush1.bf16.msra.mxu0 %v1840
    %2761 = vmatprep.subr.bf16.mxu0 %v1847
    %2762 = vmatpush1.bf16.msra.mxu0 %v1846
    %2763 = vmatprep.subr.bf16.mxu0 %v1853
    %2764 = vmatpush1.bf16.msra.mxu0 %v1852
    %2765 = vmatprep.subr.bf16.mxu0 %v1859
    %2766 = vmatpush1.bf16.msra.mxu0 %v1858
    %2767 = vmatprep.subr.bf16.mxu0 %v1865
    %2768 = vmatpush1.bf16.msra.mxu0 %v1864
    %2769 = vmatprep.subr.bf16.mxu0 %v1871
    %2770 = vmatpush1.bf16.msra.mxu0 %v1870
    %2771 = vmatprep.subr.bf16.mxu0 %v1877
    %2772 = vmatpush1.bf16.msra.mxu0 %v1876
    %2773 = vmatprep.subr.bf16.mxu0 %v1883
    %2774 = vmatpush1.bf16.msra.mxu0 %v1882
    %2775 = vmatprep.subr.bf16.mxu0 %v1889
    %2776 = vmatpush1.bf16.msra.mxu0 %v1888
    %2777 = vmatprep.subr.bf16.mxu0 %v1895
    %2778 = vmatpush1.bf16.msra.mxu0 %v1894
    %2779 = vmatprep.subr.bf16.mxu0 %v1901
    %2780 = vmatpush1.bf16.msra.mxu0 %v1900
    %2781 = vmatprep.subr.bf16.mxu0 %v1907
    %2782 = vmatpush1.bf16.msra.mxu0 %v1906
    %2783 = vmatprep.mubr.bf16.mxu0 %v537
    %2784 = vmatmul.mubr.bf16.gmra.mrb[0].mxu0 %v536
    %v2785 = vpop.f32.mrb[0].mxu0
    %v2786 = vadd.f32 %v2733, %v2785
    %v2787 = vpop.f32.mrb[0].mxu0
    %v2788 = vadd.f32 %v2735, %v2787
    %v2789 = vpop.f32.mrb[0].mxu0
    %v2790 = vadd.f32 %v2737, %v2789
    %v2791 = vpop.f32.mrb[0].mxu0
    %v2792 = vadd.f32 %v2739, %v2791
    %2793 = vmatprep.mubr.bf16.mxu0 %v545
    %2794 = vmatmul.mubr.bf16.gmra.mrb[0].mxu0 %v544
    %v2795 = vpop.f32.mrb[0].mxu0
    %v2796 = vadd.f32 %v2743, %v2795
    %v2797 = vpop.f32.mrb[0].mxu0
    %v2798 = vadd.f32 %v2745, %v2797
    %v2799 = vpop.f32.mrb[0].mxu0
    %v2800 = vadd.f32 %v2747, %v2799
    %v2801 = vpop.f32.mrb[0].mxu0
    %v2802 = vadd.f32 %v2749, %v2801
    %2803 = vdwg.mxu0
    %2804 = vmatprep.subr.bf16.mxu0 %v1913
    %2805 = vmatpush1.bf16.msra.mxu0 %v1912
    %2806 = vmatprep.subr.bf16.mxu0 %v1919
    %2807 = vmatpush1.bf16.msra.mxu0 %v1918
    %2808 = vmatprep.subr.bf16.mxu0 %v1925
    %2809 = vmatpush1.bf16.msra.mxu0 %v1924
    %2810 = vmatprep.subr.bf16.mxu0 %v1931
    %2811 = vmatpush1.bf16.msra.mxu0 %v1930
    %2812 = vmatprep.subr.bf16.mxu0 %v1937
    %2813 = vmatpush1.bf16.msra.mxu0 %v1936
    %2814 = vmatprep.subr.bf16.mxu0 %v1943
    %2815 = vmatpush1.bf16.msra.mxu0 %v1942
    %2816 = vmatprep.subr.bf16.mxu0 %v1949
    %2817 = vmatpush1.bf16.msra.mxu0 %v1948
    %2818 = vmatprep.subr.bf16.mxu0 %v1955
    %2819 = vmatpush1.bf16.msra.mxu0 %v1954
    %2820 = vmatprep.subr.bf16.mxu0 %v1961
    %2821 = vmatpush1.bf16.msra.mxu0 %v1960
    %2822 = vmatprep.subr.bf16.mxu0 %v1967
    %2823 = vmatpush1.bf16.msra.mxu0 %v1966
    %2824 = vmatprep.subr.bf16.mxu0 %v1973
    %2825 = vmatpush1.bf16.msra.mxu0 %v1972
    %2826 = vmatprep.subr.bf16.mxu0 %v1979
    %2827 = vmatpush1.bf16.msra.mxu0 %v1978
    %2828 = vmatprep.subr.bf16.mxu0 %v1985
    %2829 = vmatpush1.bf16.msra.mxu0 %v1984
    %2830 = vmatprep.subr.bf16.mxu0 %v1991
    %2831 = vmatpush1.bf16.msra.mxu0 %v1990
    %2832 = vmatprep.subr.bf16.mxu0 %v1997
    %2833 = vmatpush1.bf16.msra.mxu0 %v1996
    %2834 = vmatprep.subr.bf16.mxu0 %v2003
    %2835 = vmatpush1.bf16.msra.mxu0 %v2002
    %2836 = vmatprep.mubr.bf16.mxu0 %v539
    %2837 = vmatmul.mubr.bf16.gmra.mrb[0].mxu0 %v538
    %v2838 = vpop.f32.mrb[0].mxu0
    %v2839 = vadd.f32 %v2786, %v2838
    %v2840 = vpop.f32.mrb[0].mxu0
    %v2841 = vadd.f32 %v2788, %v2840
    %v2842 = vpop.f32.mrb[0].mxu0
    %v2843 = vadd.f32 %v2790, %v2842
    %v2844 = vpop.f32.mrb[0].mxu0
    %v2845 = vadd.f32 %v2792, %v2844
    %2846 = vmatprep.mubr.bf16.mxu0 %v547
    %2847 = vmatmul.mubr.bf16.gmra.mrb[0].mxu0 %v546
    %v2848 = vpop.f32.mrb[0].mxu0
    %v2849 = vadd.f32 %v2796, %v2848
    %v2850 = vpop.f32.mrb[0].mxu0
    %v2851 = vadd.f32 %v2798, %v2850
    %v2852 = vpop.f32.mrb[0].mxu0
    %v2853 = vadd.f32 %v2800, %v2852
    %v2854 = vpop.f32.mrb[0].mxu0
    %v2855 = vadd.f32 %v2802, %v2854
    %2856 = vdwg.mxu0
    %2857 = vmatprep.subr.bf16.mxu0 %v2009
    %2858 = vmatpush1.bf16.msra.mxu0 %v2008
    %2859 = vmatprep.subr.bf16.mxu0 %v2015
    %2860 = vmatpush1.bf16.msra.mxu0 %v2014
    %2861 = vmatprep.subr.bf16.mxu0 %v2021
    %2862 = vmatpush1.bf16.msra.mxu0 %v2020
    %2863 = vmatprep.subr.bf16.mxu0 %v2027
    %2864 = vmatpush1.bf16.msra.mxu0 %v2026
    %2865 = vmatprep.subr.bf16.mxu0 %v2033
    %2866 = vmatpush1.bf16.msra.mxu0 %v2032
    %2867 = vmatprep.subr.bf16.mxu0 %v2039
    %2868 = vmatpush1.bf16.msra.mxu0 %v2038
    %2869 = vmatprep.subr.bf16.mxu0 %v2045
    %2870 = vmatpush1.bf16.msra.mxu0 %v2044
    %2871 = vmatprep.subr.bf16.mxu0 %v2051
    %2872 = vmatpush1.bf16.msra.mxu0 %v2050
    %2873 = vmatprep.subr.bf16.mxu0 %v2057
    %2874 = vmatpush1.bf16.msra.mxu0 %v2056
    %2875 = vmatprep.subr.bf16.mxu0 %v2063
    %2876 = vmatpush1.bf16.msra.mxu0 %v2062
    %2877 = vmatprep.subr.bf16.mxu0 %v2069
    %2878 = vmatpush1.bf16.msra.mxu0 %v2068
    %2879 = vmatprep.subr.bf16.mxu0 %v2075
    %2880 = vmatpush1.bf16.msra.mxu0 %v2074
    %2881 = vmatprep.subr.bf16.mxu0 %v2081
    %2882 = vmatpush1.bf16.msra.mxu0 %v2080
    %2883 = vmatprep.subr.bf16.mxu0 %v2087
    %2884 = vmatpush1.bf16.msra.mxu0 %v2086
    %2885 = vmatprep.subr.bf16.mxu0 %v2093
    %2886 = vmatpush1.bf16.msra.mxu0 %v2092
    %2887 = vmatprep.subr.bf16.mxu0 %v2099
    %2888 = vmatpush1.bf16.msra.mxu0 %v2098
    %2889 = vmatprep.mubr.bf16.mxu0 %v541
    %2890 = vmatmul.mubr.bf16.gmra.mrb[0].mxu0 %v540
    %v2891 = vpop.f32.mrb[0].mxu0
    %v2892 = vadd.f32 %v2839, %v2891
    %v2893 = vpop.f32.mrb[0].mxu0
    %v2894 = vadd.f32 %v2841, %v2893
    %v2895 = vpop.f32.mrb[0].mxu0
    %v2896 = vadd.f32 %v2843, %v2895
    %v2897 = vpop.f32.mrb[0].mxu0
    %v2898 = vadd.f32 %v2845, %v2897
    %2899 = vmatprep.mubr.bf16.mxu0 %v549
    %2900 = vmatmul.mubr.bf16.gmra.mrb[0].mxu0 %v548
    %v2901 = vpop.f32.mrb[0].mxu0
    %v2902 = vadd.f32 %v2849, %v2901
    %v2903 = vpop.f32.mrb[0].mxu0
    %v2904 = vadd.f32 %v2851, %v2903
    %v2905 = vpop.f32.mrb[0].mxu0
    %v2906 = vadd.f32 %v2853, %v2905
    %v2907 = vpop.f32.mrb[0].mxu0
    %v2908 = vadd.f32 %v2855, %v2907
    %2909 = vdwg.mxu0
    %2910 = vmatprep.subr.bf16.mxu0 %v1723
    %2911 = vmatpush1.bf16.msra.mxu0 %v1722
    %2912 = vmatprep.subr.bf16.mxu0 %v1729
    %2913 = vmatpush1.bf16.msra.mxu0 %v1728
    %2914 = vmatprep.subr.bf16.mxu0 %v1735
    %2915 = vmatpush1.bf16.msra.mxu0 %v1734
    %2916 = vmatprep.subr.bf16.mxu0 %v1741
    %2917 = vmatpush1.bf16.msra.mxu0 %v1740
    %2918 = vmatprep.subr.bf16.mxu0 %v1747
    %2919 = vmatpush1.bf16.msra.mxu0 %v1746
    %2920 = vmatprep.subr.bf16.mxu0 %v1753
    %2921 = vmatpush1.bf16.msra.mxu0 %v1752
    %2922 = vmatprep.subr.bf16.mxu0 %v1759
    %2923 = vmatpush1.bf16.msra.mxu0 %v1758
    %2924 = vmatprep.subr.bf16.mxu0 %v1765
    %2925 = vmatpush1.bf16.msra.mxu0 %v1764
    %2926 = vmatprep.subr.bf16.mxu0 %v1771
    %2927 = vmatpush1.bf16.msra.mxu0 %v1770
    %2928 = vmatprep.subr.bf16.mxu0 %v1777
    %2929 = vmatpush1.bf16.msra.mxu0 %v1776
    %2930 = vmatprep.subr.bf16.mxu0 %v1783
    %2931 = vmatpush1.bf16.msra.mxu0 %v1782
    %2932 = vmatprep.subr.bf16.mxu0 %v1789
    %2933 = vmatpush1.bf16.msra.mxu0 %v1788
    %2934 = vmatprep.subr.bf16.mxu0 %v1795
    %2935 = vmatpush1.bf16.msra.mxu0 %v1794
    %2936 = vmatprep.subr.bf16.mxu0 %v1801
    %2937 = vmatpush1.bf16.msra.mxu0 %v1800
    %2938 = vmatprep.subr.bf16.mxu0 %v1807
    %2939 = vmatpush1.bf16.msra.mxu0 %v1806
    %2940 = vmatprep.subr.bf16.mxu0 %v1813
    %2941 = vmatpush1.bf16.msra.mxu0 %v1812
    %2942 = vmatprep.mubr.bf16.mxu0 %v535
    %2943 = vmatmul.mubr.bf16.gmra.mrb[0].mxu0 %v534
    %v2944 = vpop.f32.mrb[0].mxu0
    %v2945 = vadd.f32 %v475, %v2944
    %v2946 = vpop.f32.mrb[0].mxu0
    %v2947 = vadd.f32 %v479, %v2946
    %v2948 = vpop.f32.mrb[0].mxu0
    %v2949 = vadd.f32 %v475, %v2948
    %v2950 = vpop.f32.mrb[0].mxu0
    %v2951 = vadd.f32 %v479, %v2950
    %2952 = vmatprep.mubr.bf16.mxu0 %v543
    %2953 = vmatmul.mubr.bf16.gmra.mrb[0].mxu0 %v542
    %v2954 = vpop.f32.mrb[0].mxu0
    %v2955 = vadd.f32 %v475, %v2954
    %v2956 = vpop.f32.mrb[0].mxu0
    %v2957 = vadd.f32 %v479, %v2956
    %v2958 = vpop.f32.mrb[0].mxu0
    %v2959 = vadd.f32 %v475, %v2958
    %v2960 = vpop.f32.mrb[0].mxu0
    %v2961 = vadd.f32 %v479, %v2960
    %2962 = vdwg.mxu0
    %2963 = vmatprep.subr.bf16.mxu0 %v1819
    %2964 = vmatpush1.bf16.msra.mxu0 %v1818
    %2965 = vmatprep.subr.bf16.mxu0 %v1825
    %2966 = vmatpush1.bf16.msra.mxu0 %v1824
    %2967 = vmatprep.subr.bf16.mxu0 %v1831
    %2968 = vmatpush1.bf16.msra.mxu0 %v1830
    %2969 = vmatprep.subr.bf16.mxu0 %v1837
    %2970 = vmatpush1.bf16.msra.mxu0 %v1836
    %2971 = vmatprep.subr.bf16.mxu0 %v1843
    %2972 = vmatpush1.bf16.msra.mxu0 %v1842
    %2973 = vmatprep.subr.bf16.mxu0 %v1849
    %2974 = vmatpush1.bf16.msra.mxu0 %v1848
    %2975 = vmatprep.subr.bf16.mxu0 %v1855
    %2976 = vmatpush1.bf16.msra.mxu0 %v1854
    %2977 = vmatprep.subr.bf16.mxu0 %v1861
    %2978 = vmatpush1.bf16.msra.mxu0 %v1860
    %2979 = vmatprep.subr.bf16.mxu0 %v1867
    %2980 = vmatpush1.bf16.msra.mxu0 %v1866
    %2981 = vmatprep.subr.bf16.mxu0 %v1873
    %2982 = vmatpush1.bf16.msra.mxu0 %v1872
    %2983 = vmatprep.subr.bf16.mxu0 %v1879
    %2984 = vmatpush1.bf16.msra.mxu0 %v1878
    %2985 = vmatprep.subr.bf16.mxu0 %v1885
    %2986 = vmatpush1.bf16.msra.mxu0 %v1884
    %2987 = vmatprep.subr.bf16.mxu0 %v1891
    %2988 = vmatpush1.bf16.msra.mxu0 %v1890
    %2989 = vmatprep.subr.bf16.mxu0 %v1897
    %2990 = vmatpush1.bf16.msra.mxu0 %v1896
    %2991 = vmatprep.subr.bf16.mxu0 %v1903
    %2992 = vmatpush1.bf16.msra.mxu0 %v1902
    %2993 = vmatprep.subr.bf16.mxu0 %v1909
    %2994 = vmatpush1.bf16.msra.mxu0 %v1908
    %2995 = vmatprep.mubr.bf16.mxu0 %v537
    %2996 = vmatmul.mubr.bf16.gmra.mrb[0].mxu0 %v536
    %v2997 = vpop.f32.mrb[0].mxu0
    %v2998 = vadd.f32 %v2945, %v2997
    %v2999 = vpop.f32.mrb[0].mxu0
    %v3000 = vadd.f32 %v2947, %v2999
    %v3001 = vpop.f32.mrb[0].mxu0
    %v3002 = vadd.f32 %v2949, %v3001
    %v3003 = vpop.f32.mrb[0].mxu0
    %v3004 = vadd.f32 %v2951, %v3003
    %3005 = vmatprep.mubr.bf16.mxu0 %v545
    %3006 = vmatmul.mubr.bf16.gmra.mrb[0].mxu0 %v544
    %v3007 = vpop.f32.mrb[0].mxu0
    %v3008 = vadd.f32 %v2955, %v3007
    %v3009 = vpop.f32.mrb[0].mxu0
    %v3010 = vadd.f32 %v2957, %v3009
    %v3011 = vpop.f32.mrb[0].mxu0
    %v3012 = vadd.f32 %v2959, %v3011
    %v3013 = vpop.f32.mrb[0].mxu0
    %v3014 = vadd.f32 %v2961, %v3013
    %3015 = vdwg.mxu0
    %3016 = vmatprep.subr.bf16.mxu0 %v1915
    %3017 = vmatpush1.bf16.msra.mxu0 %v1914
    %3018 = vmatprep.subr.bf16.mxu0 %v1921
    %3019 = vmatpush1.bf16.msra.mxu0 %v1920
    %3020 = vmatprep.subr.bf16.mxu0 %v1927
    %3021 = vmatpush1.bf16.msra.mxu0 %v1926
    %3022 = vmatprep.subr.bf16.mxu0 %v1933
    %3023 = vmatpush1.bf16.msra.mxu0 %v1932
    %3024 = vmatprep.subr.bf16.mxu0 %v1939
    %3025 = vmatpush1.bf16.msra.mxu0 %v1938
    %3026 = vmatprep.subr.bf16.mxu0 %v1945
    %3027 = vmatpush1.bf16.msra.mxu0 %v1944
    %3028 = vmatprep.subr.bf16.mxu0 %v1951
    %3029 = vmatpush1.bf16.msra.mxu0 %v1950
    %3030 = vmatprep.subr.bf16.mxu0 %v1957
    %3031 = vmatpush1.bf16.msra.mxu0 %v1956
    %3032 = vmatprep.subr.bf16.mxu0 %v1963
    %3033 = vmatpush1.bf16.msra.mxu0 %v1962
    %3034 = vmatprep.subr.bf16.mxu0 %v1969
    %3035 = vmatpush1.bf16.msra.mxu0 %v1968
    %3036 = vmatprep.subr.bf16.mxu0 %v1975
    %3037 = vmatpush1.bf16.msra.mxu0 %v1974
    %3038 = vmatprep.subr.bf16.mxu0 %v1981
    %3039 = vmatpush1.bf16.msra.mxu0 %v1980
    %3040 = vmatprep.subr.bf16.mxu0 %v1987
    %3041 = vmatpush1.bf16.msra.mxu0 %v1986
    %3042 = vmatprep.subr.bf16.mxu0 %v1993
    %3043 = vmatpush1.bf16.msra.mxu0 %v1992
    %3044 = vmatprep.subr.bf16.mxu0 %v1999
    %3045 = vmatpush1.bf16.msra.mxu0 %v1998
    %3046 = vmatprep.subr.bf16.mxu0 %v2005
    %3047 = vmatpush1.bf16.msra.mxu0 %v2004
    %3048 = vmatprep.mubr.bf16.mxu0 %v539
    %3049 = vmatmul.mubr.bf16.gmra.mrb[0].mxu0 %v538
    %v3050 = vpop.f32.mrb[0].mxu0
    %v3051 = vadd.f32 %v2998, %v3050
    %v3052 = vpop.f32.mrb[0].mxu0
    %v3053 = vadd.f32 %v3000, %v3052
    %v3054 = vpop.f32.mrb[0].mxu0
    %v3055 = vadd.f32 %v3002, %v3054
    %v3056 = vpop.f32.mrb[0].mxu0
    %v3057 = vadd.f32 %v3004, %v3056
    %3058 = vmatprep.mubr.bf16.mxu0 %v547
    %3059 = vmatmul.mubr.bf16.gmra.mrb[0].mxu0 %v546
    %v3060 = vpop.f32.mrb[0].mxu0
    %v3061 = vadd.f32 %v3008, %v3060
    %v3062 = vpop.f32.mrb[0].mxu0
    %v3063 = vadd.f32 %v3010, %v3062
    %v3064 = vpop.f32.mrb[0].mxu0
    %v3065 = vadd.f32 %v3012, %v3064
    %v3066 = vpop.f32.mrb[0].mxu0
    %v3067 = vadd.f32 %v3014, %v3066
    %3068 = vdwg.mxu0
    %3069 = vmatprep.subr.bf16.mxu0 %v2011
    %3070 = vmatpush1.bf16.msra.mxu0 %v2010
    %3071 = vmatprep.subr.bf16.mxu0 %v2017
    %3072 = vmatpush1.bf16.msra.mxu0 %v2016
    %3073 = vmatprep.subr.bf16.mxu0 %v2023
    %3074 = vmatpush1.bf16.msra.mxu0 %v2022
    %3075 = vmatprep.subr.bf16.mxu0 %v2029
    %3076 = vmatpush1.bf16.msra.mxu0 %v2028
    %3077 = vmatprep.subr.bf16.mxu0 %v2035
    %3078 = vmatpush1.bf16.msra.mxu0 %v2034
    %3079 = vmatprep.subr.bf16.mxu0 %v2041
    %3080 = vmatpush1.bf16.msra.mxu0 %v2040
    %3081 = vmatprep.subr.bf16.mxu0 %v2047
    %3082 = vmatpush1.bf16.msra.mxu0 %v2046
    %3083 = vmatprep.subr.bf16.mxu0 %v2053
    %3084 = vmatpush1.bf16.msra.mxu0 %v2052
    %3085 = vmatprep.subr.bf16.mxu0 %v2059
    %3086 = vmatpush1.bf16.msra.mxu0 %v2058
    %3087 = vmatprep.subr.bf16.mxu0 %v2065
    %3088 = vmatpush1.bf16.msra.mxu0 %v2064
    %3089 = vmatprep.subr.bf16.mxu0 %v2071
    %3090 = vmatpush1.bf16.msra.mxu0 %v2070
    %3091 = vmatprep.subr.bf16.mxu0 %v2077
    %3092 = vmatpush1.bf16.msra.mxu0 %v2076
    %3093 = vmatprep.subr.bf16.mxu0 %v2083
    %3094 = vmatpush1.bf16.msra.mxu0 %v2082
    %3095 = vmatprep.subr.bf16.mxu0 %v2089
    %3096 = vmatpush1.bf16.msra.mxu0 %v2088
    %3097 = vmatprep.subr.bf16.mxu0 %v2095
    %3098 = vmatpush1.bf16.msra.mxu0 %v2094
    %3099 = vmatprep.subr.bf16.mxu0 %v2101
    %3100 = vmatpush1.bf16.msra.mxu0 %v2100
    %3101 = vmatprep.mubr.bf16.mxu0 %v541
    %3102 = vmatmul.mubr.bf16.gmra.mrb[0].mxu0 %v540
    %v3103 = vpop.f32.mrb[0].mxu0
    %v3104 = vadd.f32 %v3051, %v3103
    %v3105 = vpop.f32.mrb[0].mxu0
    %v3106 = vadd.f32 %v3053, %v3105
    %v3107 = vpop.f32.mrb[0].mxu0
    %v3108 = vadd.f32 %v3055, %v3107
    %v3109 = vpop.f32.mrb[0].mxu0
    %v3110 = vadd.f32 %v3057, %v3109
    %3111 = vmatprep.mubr.bf16.mxu0 %v549
    %3112 = vmatmul.mubr.bf16.gmra.mrb[0].mxu0 %v548
    %v3113 = vpop.f32.mrb[0].mxu0
    %v3114 = vadd.f32 %v3061, %v3113
    %v3115 = vpop.f32.mrb[0].mxu0
    %v3116 = vadd.f32 %v3063, %v3115
    %v3117 = vpop.f32.mrb[0].mxu0
    %v3118 = vadd.f32 %v3065, %v3117
    %v3119 = vpop.f32.mrb[0].mxu0
    %v3120 = vadd.f32 %v3067, %v3119
    %3121 = vdwg.mxu0
    %3122 = vst [vmem:[#allocation8] sm:$0xff] %v2680
    %3123 = vst [vmem:[#allocation8 + $0x8] sm:$0xff] %v2682
    %3124 = vst [vmem:[#allocation8 + $0x10] sm:$0xff] %v2892
    %3125 = vst [vmem:[#allocation8 + $0x18] sm:$0xff] %v2894
    %3126 = vst [vmem:[#allocation8 + $0x20] sm:$0xff] %v3104
    %3127 = vst [vmem:[#allocation8 + $0x28] sm:$0xff] %v3106
    %3128 = vst [vmem:[#allocation8 + $0x30] sm:$0xff] %v2684
    %3129 = vst [vmem:[#allocation8 + $0x38] sm:$0xff] %v2686
    %3130 = vst [vmem:[#allocation8 + $0x40] sm:$0xff] %v2896
    %3131 = vst [vmem:[#allocation8 + $0x48] sm:$0xff] %v2898
    %3132 = vst [vmem:[#allocation8 + $0x50] sm:$0xff] %v3108
    %3133 = vst [vmem:[#allocation8 + $0x58] sm:$0xff] %v3110
    %3134 = vst [vmem:[#allocation8 + $0x60] sm:$0xff] %v2690
    %3135 = vst [vmem:[#allocation8 + $0x68] sm:$0xff] %v2692
    %3136 = vst [vmem:[#allocation8 + $0x70] sm:$0xff] %v2902
    %3137 = vst [vmem:[#allocation8 + $0x78] sm:$0xff] %v2904
    %3138 = vst [vmem:[#allocation8 + $0x80] sm:$0xff] %v3114
    %3139 = vst [vmem:[#allocation8 + $0x88] sm:$0xff] %v3116
    %3140 = vst [vmem:[#allocation8 + $0x90] sm:$0xff] %v2694
    %3141 = vst [vmem:[#allocation8 + $0x98] sm:$0xff] %v2696
    %3142 = vst [vmem:[#allocation8 + $0xa0] sm:$0xff] %v2906
    %3143 = vst [vmem:[#allocation8 + $0xa8] sm:$0xff] %v2908
    %3144 = vst [vmem:[#allocation8 + $0xb0] sm:$0xff] %v3118
    %3145 = vst [vmem:[#allocation8 + $0xb8] sm:$0xff] %v3120
    // Predicated region
    $region26: #{tpu_custom_call.1} parent=1 // pred_check
      _
    $region27: #{tpu_custom_call.1} parent=1 // pred_check_branch
      %3147 = sbr.rel (0) target = $region29
    $region28: #{tpu_custom_call.1} parent=1 // pred_region
      %s3149 = ssub.s32 3072, 3072
      %3150 = vsyncadd [#allocation4], %s3149
      %s3151 = sshll.u32 [#allocation8], 4
      %s3152 = int_to_ptr.vmem [resolvable:$true] %s3151
      %3157 = dma.vmem_to_hbm [thread:$0]  %s3152, 3072, %s3, [#allocation4], 768, 768, 48
    $region29: #{tpu_custom_call.1} parent=1 // pred_fallthru
      _
    // Predicated region
    $region30: #{tpu_custom_call.1} parent=1 // pred_check
      _
    $region31: #{tpu_custom_call.1} parent=1 // pred_check_branch
      %3159 = sbr.rel (0) target = $region33
    $region32: #{tpu_custom_call.1} parent=1 // pred_region
      %3160 = dma.done [#allocation4], 3072
    $region33: #{tpu_custom_call.1} parent=1 // pred_fallthru
      _
    %3161 = vsyncpa [#allocation3], 1
    %3162 = vsyncpa [#allocation6], 1
    %3163 = vsyncpa [#allocation4], 1

</llo_original>
